<compile_context>
chip_gen: v6e
topology: v6e:2x2x1
jax: 0.10.0
libtpu: 0.0.40
codegen_flags: <defaults>
</compile_context>

<pallas_src>
import functools

import jax
import jax.numpy as jnp
import numpy as np
from jax.experimental import pallas as pl
from jax.experimental.pallas import tpu as pltpu


def _round_up(x, m):
    return (x + m - 1) // m * m


def _gated_attn_pool_kernel(x_ref, wvu_ref, bvu_ref, wa_ref, ba_ref,
                            wo_ref, bo_ref, out_ref, attn_ref, *, n_valid):
    bb, n_pad, d = x_ref.shape           # batch block, padded tokens, feat dim
    h = attn_ref.shape[1]                # num heads (tiny, static)
    int_pad = wvu_ref.shape[1] // 2      # padded intermediate dim (x128)

    x = x_ref[...].astype(jnp.float32)                        # (bb, Np, D)
    x2d = x.reshape(bb * n_pad, d)                             # fold batch into M

    # Fused gating projection: one (bb*Np, D) @ (D, 2*int_pad) matmul, then
    # lane-aligned split into the tanh (attention_v) and GELU (attention_u)
    # halves.  Dropout layers are identity in eval mode.
    vu = jnp.dot(x2d, wvu_ref[...],
                 preferred_element_type=jnp.float32) + bvu_ref[...]
    v = jnp.tanh(vu[:, :int_pad])
    hu = vu[:, int_pad:]
    u = 0.5 * hu * (1.0 + jax.lax.erf(hu * 0.7071067811865476))  # exact GELU
    gated = v * u                                               # (bb*Np, int_pad)

    # attention: Linear(int_pad, H) -> scores, then lane-dense (bb, H, Np).
    scores = jnp.dot(gated, wa_ref[...],
                     preferred_element_type=jnp.float32) + ba_ref[...]
    s_t = jnp.transpose(scores.reshape(bb, n_pad, h), (0, 2, 1))  # (bb, H, Np)

    # Mask padded tokens so they get zero attention weight.
    if n_valid < n_pad:
        tok = jax.lax.broadcasted_iota(jnp.int32, (bb, h, n_pad), 2)
        s_t = jnp.where(tok < n_valid, s_t, -1e30)

    # softmax over tokens (last dim is lane-dense).
    m = jnp.max(s_t, axis=-1, keepdims=True)
    e = jnp.exp(s_t - m)
    denom = jnp.sum(e, axis=-1, keepdims=True)
    # exact reciprocal keeps ~1e-5 parity with torch; approx=True (EUP) is an
    # option if looser tolerance is acceptable.
    attn = e * pl.reciprocal(denom, approx=False)               # (bb, H, Np)
    attn_ref[...] = attn.astype(attn_ref.dtype)

    # bmm(attn, x): one batched contraction over tokens -> (bb, H, D)
    pooled = jnp.einsum("bhn,bnd->bhd", attn, x,
                        preferred_element_type=jnp.float32)

    # out_proj: bo + sum_h pooled[:, h, :] @ wo[h].  H is tiny and static;
    # each dot has M = bb rows.
    acc = jnp.dot(pooled[:, 0, :], wo_ref[0],
                  preferred_element_type=jnp.float32)
    for i in range(1, h):
        acc = acc + jnp.dot(pooled[:, i, :], wo_ref[i],
                            preferred_element_type=jnp.float32)
    out_ref[...] = (acc + bo_ref[...]).astype(out_ref.dtype)


def gated_attention_pooler(x, params, *, block_b=None):
    """x: (B, N, D) float32. params: dict of transposed weights / biases."""
    B, N, D = x.shape
    int_dim = params["wv"].shape[1]
    H, _, out_dim = params["wo"].shape

    n_pad = _round_up(N, 128)            # lane-dense attn stores + MXU-friendly M
    out_pad = _round_up(out_dim, 128)    # lane-dense pooled-output stores
    int_pad = _round_up(int_dim, 128)    # lane-aligned split of fused gating matmul

    if block_b is None:
        # Target ~1024 matmul rows per grid step without exceeding the batch.
        block_b = max(1, min(B, 1024 // n_pad))
    b_pad = _round_up(B, block_b)

    x_p = x
    if (b_pad, n_pad) != (B, N):
        x_p = jnp.pad(x, ((0, b_pad - B), (0, n_pad - N), (0, 0)))

    # Fuse wv/wu (and their biases) into one gating weight, padded to int_pad.
    pad_i = int_pad - int_dim
    wv_p = jnp.pad(params["wv"], ((0, 0), (0, pad_i))) if pad_i else params["wv"]
    wu_p = jnp.pad(params["wu"], ((0, 0), (0, pad_i))) if pad_i else params["wu"]
    bv_p = jnp.pad(params["bv"], ((0, 0), (0, pad_i))) if pad_i else params["bv"]
    bu_p = jnp.pad(params["bu"], ((0, 0), (0, pad_i))) if pad_i else params["bu"]
    wa_p = jnp.pad(params["wa"], ((0, pad_i), (0, 0))) if pad_i else params["wa"]
    wvu = jnp.concatenate([wv_p, wu_p], axis=1)        # (D, 2*int_pad)
    bvu = jnp.concatenate([bv_p, bu_p], axis=1)        # (1, 2*int_pad)

    wo_p, bo_p = params["wo"], params["bo"]
    if out_pad != out_dim:
        wo_p = jnp.pad(wo_p, ((0, 0), (0, 0), (0, out_pad - out_dim)))
        bo_p = jnp.pad(bo_p, ((0, 0), (0, out_pad - out_dim)))

    kernel = functools.partial(_gated_attn_pool_kernel, n_valid=N)
    full2d = lambda b: (0, 0)
    full3d = lambda b: (0, 0, 0)

    out_shapes = (
        jax.ShapeDtypeStruct((b_pad, out_pad), x.dtype),
        jax.ShapeDtypeStruct((b_pad, H, n_pad), x.dtype),
    )

    out_p, attn_p = pl.pallas_call(
        kernel,
        out_shape=out_shapes,
        grid_spec=pltpu.PrefetchScalarGridSpec(
            num_scalar_prefetch=0,
            grid=(b_pad // block_b,),
            in_specs=[
                pl.BlockSpec((block_b, n_pad, D), lambda b: (b, 0, 0)),  # x
                pl.BlockSpec((D, 2 * int_pad), full2d),                  # wvu
                pl.BlockSpec((1, 2 * int_pad), full2d),                  # bvu
                pl.BlockSpec((int_pad, H), full2d),                      # wa
                pl.BlockSpec((1, H), full2d),                            # ba
                pl.BlockSpec((H, D, out_pad), full3d),                   # wo
                pl.BlockSpec((1, out_pad), full2d),                      # bo
            ],
            out_specs=[
                pl.BlockSpec((block_b, out_pad), lambda b: (b, 0)),      # pooled
                pl.BlockSpec((block_b, H, n_pad), lambda b: (b, 0, 0)),  # attn
            ],
        ),
        compiler_params=pltpu.CompilerParams(
            dimension_semantics=("parallel",)),
    )(x_p, wvu, bvu, wa_p, params["ba"], wo_p, bo_p)

    # Slice the lane/batch padding back off.
    return out_p[:B, :out_dim], attn_p[:B, :, :N]


def _reference(x, params):
    """Pure-JAX reference matching the PyTorch forward (eval mode)."""
    v = jnp.tanh(x @ params["wv"] + params["bv"][0])
    hu = x @ params["wu"] + params["bu"][0]
    u = 0.5 * hu * (1.0 + jax.lax.erf(hu / jnp.sqrt(2.0)))
    scores = (v * u) @ params["wa"] + params["ba"][0]                   # (B, N, H)
    attn = jax.nn.softmax(jnp.transpose(scores, (0, 2, 1)), axis=-1)    # (B, H, N)
    pooled = jnp.einsum("bhn,bnd->bhd", attn, x)                        # (B, H, D)
    flat = pooled.reshape(x.shape[0], -1)
    H, D, out_dim = params["wo"].shape
    out = flat @ params["wo"].reshape(H * D, out_dim) + params["bo"][0]
    return out, attn


def _init_params(key, dim, int_dim, num_heads, out_dim):
    ks = jax.random.split(key, 8)
    s = lambda fan_in: 1.0 / np.sqrt(fan_in)
    # Weights stored already transposed to (in, out) for `x @ W`.
    wv = jax.random.uniform(ks[0], (dim, int_dim), jnp.float32, -s(dim), s(dim))
    bv = jax.random.uniform(ks[1], (1, int_dim), jnp.float32, -s(dim), s(dim))
    wu = jax.random.uniform(ks[2], (dim, int_dim), jnp.float32, -s(dim), s(dim))
    bu = jax.random.uniform(ks[3], (1, int_dim), jnp.float32, -s(dim), s(dim))
    wa = jax.random.uniform(ks[4], (int_dim, num_heads), jnp.float32,
                            -s(int_dim), s(int_dim))
    ba = jax.random.uniform(ks[5], (1, num_heads), jnp.float32,
                            -s(int_dim), s(int_dim))
    fan = dim * num_heads
    wo = jax.random.uniform(ks[6], (num_heads, dim, out_dim), jnp.float32,
                            -s(fan), s(fan))
    bo = jax.random.uniform(ks[7], (1, out_dim), jnp.float32, -s(fan), s(fan))
    return dict(wv=wv, bv=bv, wu=wu, bu=bu, wa=wa, ba=ba, wo=wo, bo=bo)


if __name__ == "__main__":
    B, N, dim = 2, 8, 32
    int_dim, num_heads, out_dim = 64, 2, 16

    key = jax.random.PRNGKey(0)
    kx, kp = jax.random.split(key)
    x = jax.random.normal(kx, (B, N, dim), jnp.float32)
    params = _init_params(kp, dim, int_dim, num_heads, out_dim)

    out, attn = gated_attention_pooler(x, params)
    out, attn = jax.block_until_ready((out, attn))

    ref_out, ref_attn = _reference(x, params)
    np.testing.assert_allclose(np.asarray(out), np.asarray(ref_out),
                               rtol=1e-4, atol=1e-5)
    np.testing.assert_allclose(np.asarray(attn), np.asarray(ref_attn),
                               rtol=1e-4, atol=1e-5)

    # TODO(synk): training-mode Dropout(p=0.1) not implemented (eval-mode identity).
    # TODO(synk): out_dim=None path (out_proj = nn.Identity) not implemented;
    #             pass an identity wo / zero bo to emulate it.
    print("KERNEL_OK")
</pallas_src>

<mosaic_0001>
module attributes {stable_mosaic.version = 11 : i64} {
  func.func @_gated_attn_pool_kernel(%arg0: i32, %arg1: memref<2x128x32xf32, #tpu.memory_space<vmem>>, %arg2: memref<32x256xf32, #tpu.memory_space<vmem>>, %arg3: memref<1x256xf32, #tpu.memory_space<vmem>>, %arg4: memref<128x2xf32, #tpu.memory_space<vmem>>, %arg5: memref<1x2xf32, #tpu.memory_space<vmem>>, %arg6: memref<2x32x128xf32, #tpu.memory_space<vmem>>, %arg7: memref<1x128xf32, #tpu.memory_space<vmem>>, %arg8: memref<2x128xf32, #tpu.memory_space<vmem>>, %arg9: memref<2x2x128xf32, #tpu.memory_space<vmem>>) attributes {dimension_semantics = [#tpu.dimension_semantics<parallel>], iteration_bounds = array<i64: 1>, scalar_prefetch = 0 : i64, scratch_operands = 0 : i64, tpu.core_type = #tpu.core_type<tc>, window_params = [{transform_indices = @transform_0, window_bounds = array<i64: 2, 128, 32>}, {pipeline_mode = #tpu.pipeline_mode<synchronous>, transform_indices = @transform_1, window_bounds = array<i64: 32, 256>}, {pipeline_mode = #tpu.pipeline_mode<synchronous>, transform_indices = @transform_2, window_bounds = array<i64: 1, 256>}, {pipeline_mode = #tpu.pipeline_mode<synchronous>, transform_indices = @transform_3, window_bounds = array<i64: 128, 2>}, {pipeline_mode = #tpu.pipeline_mode<synchronous>, transform_indices = @transform_4, window_bounds = array<i64: 1, 2>}, {pipeline_mode = #tpu.pipeline_mode<synchronous>, transform_indices = @transform_5, window_bounds = array<i64: 2, 32, 128>}, {pipeline_mode = #tpu.pipeline_mode<synchronous>, transform_indices = @transform_6, window_bounds = array<i64: 1, 128>}, {transform_indices = @transform_7, window_bounds = array<i64: 2, 128>}, {transform_indices = @transform_8, window_bounds = array<i64: 2, 2, 128>}]} {
    %c0 = arith.constant 0 : index
    %c0_0 = arith.constant 0 : index
    %c0_1 = arith.constant 0 : index
    %0 = vector.load %arg1[%c0, %c0_0, %c0_1] : memref<2x128x32xf32, #tpu.memory_space<vmem>>, vector<2x128x32xf32>
    %1 = vector.shape_cast %0 : vector<2x128x32xf32> to vector<256x32xf32>
    %c0_2 = arith.constant 0 : index
    %c0_3 = arith.constant 0 : index
    %2 = vector.load %arg2[%c0_2, %c0_3] : memref<32x256xf32, #tpu.memory_space<vmem>>, vector<32x256xf32>
    %cst = arith.constant dense<0.000000e+00> : vector<256x256xf32>
    %3 = tpu.matmul %1, %2, %cst {dimension_numbers = #tpu.dot_dimension_numbers<[1], [0], [0], [1], [0, 0, 1, 1], [], []>} : vector<256x32xf32>, vector<32x256xf32>, vector<256x256xf32> -> vector<256x256xf32>
    %c0_4 = arith.constant 0 : index
    %c0_5 = arith.constant 0 : index
    %4 = vector.load %arg3[%c0_4, %c0_5] : memref<1x256xf32, #tpu.memory_space<vmem>>, vector<1x256xf32>
    %5 = vector.broadcast %4 : vector<1x256xf32> to vector<256x256xf32>
    %6 = arith.addf %3, %5 : vector<256x256xf32>
    %7 = vector.extract_strided_slice %6 {offsets = [0, 0], sizes = [256, 128], strides = [1, 1]} : vector<256x256xf32> to vector<256x128xf32>
    %8 = math.tanh %7 : vector<256x128xf32>
    %9 = vector.extract_strided_slice %6 {offsets = [0, 128], sizes = [256, 128], strides = [1, 1]} : vector<256x256xf32> to vector<256x128xf32>
    %cst_6 = arith.constant 5.000000e-01 : f32
    %10 = vector.broadcast %cst_6 : f32 to vector<256x128xf32>
    %11 = arith.mulf %10, %9 : vector<256x128xf32>
    %cst_7 = arith.constant 0.707106769 : f32
    %12 = vector.broadcast %cst_7 : f32 to vector<256x128xf32>
    %13 = arith.mulf %9, %12 : vector<256x128xf32>
    %14 = math.erf %13 : vector<256x128xf32>
    %cst_8 = arith.constant 1.000000e+00 : f32
    %15 = vector.broadcast %cst_8 : f32 to vector<256x128xf32>
    %16 = arith.addf %15, %14 : vector<256x128xf32>
    %17 = arith.mulf %11, %16 : vector<256x128xf32>
    %18 = arith.mulf %8, %17 : vector<256x128xf32>
    %c0_9 = arith.constant 0 : index
    %c0_10 = arith.constant 0 : index
    %19 = vector.load %arg4[%c0_9, %c0_10] : memref<128x2xf32, #tpu.memory_space<vmem>>, vector<128x2xf32>
    %cst_11 = arith.constant dense<0.000000e+00> : vector<256x2xf32>
    %20 = tpu.matmul %18, %19, %cst_11 {dimension_numbers = #tpu.dot_dimension_numbers<[1], [0], [0], [1], [0, 0, 1, 1], [], []>} : vector<256x128xf32>, vector<128x2xf32>, vector<256x2xf32> -> vector<256x2xf32>
    %c0_12 = arith.constant 0 : index
    %c0_13 = arith.constant 0 : index
    %21 = vector.load %arg5[%c0_12, %c0_13] : memref<1x2xf32, #tpu.memory_space<vmem>>, vector<1x2xf32>
    %22 = vector.broadcast %21 : vector<1x2xf32> to vector<256x2xf32>
    %23 = arith.addf %20, %22 : vector<256x2xf32>
    %24 = vector.shape_cast %23 : vector<256x2xf32> to vector<2x128x2xf32>
    %25 = tpu.transpose %24, [0, 2, 1] : vector<2x128x2xf32> -> vector<2x2x128xf32>
    %26 = tpu.iota {dimensions = array<i32: 2>} : vector<2x2x128xi32>
    %c8_i32 = arith.constant 8 : i32
    %27 = vector.broadcast %c8_i32 : i32 to vector<2x2x128xi32>
    %28 = arith.cmpi slt, %26, %27 : vector<2x2x128xi32>
    %cst_14 = arith.constant -1.000000e+30 : f32
    %29 = vector.broadcast %cst_14 : f32 to vector<2x2x128xf32>
    %30 = arith.select %28, %25, %29 : vector<2x2x128xi1>, vector<2x2x128xf32>
    %cst_15 = arith.constant dense<0xFF800000> : vector<2x2xf32>
    %31 = vector.multi_reduction <maximumf>, %30, %cst_15 [2] : vector<2x2x128xf32> to vector<2x2xf32>
    %32 = vector.shape_cast %31 : vector<2x2xf32> to vector<2x2x1xf32>
    %33 = vector.broadcast %32 : vector<2x2x1xf32> to vector<2x2x128xf32>
    %34 = arith.subf %30, %33 : vector<2x2x128xf32>
    %35 = math.exp %34 : vector<2x2x128xf32>
    %cst_16 = arith.constant dense<0.000000e+00> : vector<2x2xf32>
    %36 = vector.multi_reduction <add>, %35, %cst_16 [2] : vector<2x2x128xf32> to vector<2x2xf32>
    %37 = vector.shape_cast %36 : vector<2x2xf32> to vector<2x2x1xf32>
    %38 = tpu.reciprocal %37 : vector<2x2x1xf32> -> vector<2x2x1xf32>
    %39 = vector.broadcast %38 : vector<2x2x1xf32> to vector<2x2x128xf32>
    %40 = arith.mulf %35, %39 : vector<2x2x128xf32>
    %c0_17 = arith.constant 0 : index
    %c0_18 = arith.constant 0 : index
    %c0_19 = arith.constant 0 : index
    %41 = vector.load %arg9[%c0_17, %c0_18, %c0_19] : memref<2x2x128xf32, #tpu.memory_space<vmem>>, vector<2x2x128xf32>
    tpu.vector_store %arg9[%c0_17, %c0_18, %c0_19], %40 {strides = array<i32>} : memref<2x2x128xf32, #tpu.memory_space<vmem>>, vector<2x2x128xf32>,
    "tpu.trace_start"() <{level = 10 : i32, message = "bhn,bnd->bhd"}> : () -> ()
    %cst_20 = arith.constant dense<0.000000e+00> : vector<2x2x32xf32>
    %42 = tpu.matmul %40, %0, %cst_20 {dimension_numbers = #tpu.dot_dimension_numbers<[2], [1], [1], [2], [0, 0, 0, 1, 1, 2], [0], [0]>} : vector<2x2x128xf32>, vector<2x128x32xf32>, vector<2x2x32xf32> -> vector<2x2x32xf32>
    "tpu.trace_stop"() : () -> ()
    %43 = vector.extract_strided_slice %42 {offsets = [0, 0, 0], sizes = [2, 1, 32], strides = [1, 1, 1]} : vector<2x2x32xf32> to vector<2x1x32xf32>
    %44 = vector.shape_cast %43 : vector<2x1x32xf32> to vector<2x32xf32>
    %c0_21 = arith.constant 0 : index
    %c0_22 = arith.constant 0 : index
    %c0_23 = arith.constant 0 : index
    %45 = vector.load %arg6[%c0_21, %c0_22, %c0_23] : memref<2x32x128xf32, #tpu.memory_space<vmem>>, vector<1x32x128xf32>
    %46 = vector.shape_cast %45 : vector<1x32x128xf32> to vector<32x128xf32>
    %cst_24 = arith.constant dense<0.000000e+00> : vector<2x128xf32>
    %47 = tpu.matmul %44, %46, %cst_24 {dimension_numbers = #tpu.dot_dimension_numbers<[1], [0], [0], [1], [0, 0, 1, 1], [], []>} : vector<2x32xf32>, vector<32x128xf32>, vector<2x128xf32> -> vector<2x128xf32>
    %48 = vector.extract_strided_slice %42 {offsets = [0, 1, 0], sizes = [2, 1, 32], strides = [1, 1, 1]} : vector<2x2x32xf32> to vector<2x1x32xf32>
    %49 = vector.shape_cast %48 : vector<2x1x32xf32> to vector<2x32xf32>
    %c1 = arith.constant 1 : index
    %c0_25 = arith.constant 0 : index
    %c0_26 = arith.constant 0 : index
    %50 = vector.load %arg6[%c1, %c0_25, %c0_26] : memref<2x32x128xf32, #tpu.memory_space<vmem>>, vector<1x32x128xf32>
    %51 = vector.shape_cast %50 : vector<1x32x128xf32> to vector<32x128xf32>
    %cst_27 = arith.constant dense<0.000000e+00> : vector<2x128xf32>
    %52 = tpu.matmul %49, %51, %cst_27 {dimension_numbers = #tpu.dot_dimension_numbers<[1], [0], [0], [1], [0, 0, 1, 1], [], []>} : vector<2x32xf32>, vector<32x128xf32>, vector<2x128xf32> -> vector<2x128xf32>
    %53 = arith.addf %47, %52 : vector<2x128xf32>
    %c0_28 = arith.constant 0 : index
    %c0_29 = arith.constant 0 : index
    %54 = vector.load %arg7[%c0_28, %c0_29] : memref<1x128xf32, #tpu.memory_space<vmem>>, vector<1x128xf32>
    %55 = vector.broadcast %54 : vector<1x128xf32> to vector<2x128xf32>
    %56 = arith.addf %53, %55 : vector<2x128xf32>
    %c0_30 = arith.constant 0 : index
    %c0_31 = arith.constant 0 : index
    %57 = vector.load %arg8[%c0_30, %c0_31] : memref<2x128xf32, #tpu.memory_space<vmem>>, vector<2x128xf32>
    tpu.vector_store %arg8[%c0_30, %c0_31], %56 {strides = array<i32>} : memref<2x128xf32, #tpu.memory_space<vmem>>, vector<2x128xf32>,
    return
  }
  func.func @transform_0(%arg0: i32) -> (i32, i32, i32) {
    %c0_i32 = arith.constant 0 : i32
    %c0_i32_0 = arith.constant 0 : i32
    %c0_i32_1 = arith.constant 0 : i32
    return %arg0, %c0_i32, %c0_i32_0 : i32, i32, i32
  }
  func.func @transform_1(%arg0: i32) -> (i32, i32) {
    %c0_i32 = arith.constant 0 : i32
    %c0_i32_0 = arith.constant 0 : i32
    %c0_i32_1 = arith.constant 0 : i32
    return %c0_i32, %c0_i32_0 : i32, i32
  }
  func.func @transform_2(%arg0: i32) -> (i32, i32) {
    %c0_i32 = arith.constant 0 : i32
    %c0_i32_0 = arith.constant 0 : i32
    %c0_i32_1 = arith.constant 0 : i32
    return %c0_i32, %c0_i32_0 : i32, i32
  }
  func.func @transform_3(%arg0: i32) -> (i32, i32) {
    %c0_i32 = arith.constant 0 : i32
    %c0_i32_0 = arith.constant 0 : i32
    %c0_i32_1 = arith.constant 0 : i32
    return %c0_i32, %c0_i32_0 : i32, i32
  }
  func.func @transform_4(%arg0: i32) -> (i32, i32) {
    %c0_i32 = arith.constant 0 : i32
    %c0_i32_0 = arith.constant 0 : i32
    %c0_i32_1 = arith.constant 0 : i32
    return %c0_i32, %c0_i32_0 : i32, i32
  }
  func.func @transform_5(%arg0: i32) -> (i32, i32, i32) {
    %c0_i32 = arith.constant 0 : i32
    %c0_i32_0 = arith.constant 0 : i32
    %c0_i32_1 = arith.constant 0 : i32
    %c0_i32_2 = arith.constant 0 : i32
    return %c0_i32, %c0_i32_0, %c0_i32_1 : i32, i32, i32
  }
  func.func @transform_6(%arg0: i32) -> (i32, i32) {
    %c0_i32 = arith.constant 0 : i32
    %c0_i32_0 = arith.constant 0 : i32
    %c0_i32_1 = arith.constant 0 : i32
    return %c0_i32, %c0_i32_0 : i32, i32
  }
  func.func @transform_7(%arg0: i32) -> (i32, i32) {
    %c0_i32 = arith.constant 0 : i32
    %c0_i32_0 = arith.constant 0 : i32
    return %arg0, %c0_i32 : i32, i32
  }
  func.func @transform_8(%arg0: i32) -> (i32, i32, i32) {
    %c0_i32 = arith.constant 0 : i32
    %c0_i32_0 = arith.constant 0 : i32
    %c0_i32_1 = arith.constant 0 : i32
    return %arg0, %c0_i32, %c0_i32_0 : i32, i32, i32
  }
}

</mosaic_0001>

<llo_original>
// kernel: tpu_custom_call.1
$region0: #{tpu_custom_call.1}
  #allocation0 [shape = 'u32[]', space=smem, size = 0x4, offset = 0x4, fixed_abs, tag = 'smem constant byte address 0x4 - core index']
  #allocation1 [shape = 'u32[144,128]{1,0:T(1,128)}', space=vmem, size = 0x12000, scoped, tag = 'internal scratch']
  %s0 = inlined_call_operand.vmem [shape: f32[2,128,32], index: 0, kind: input, shape index: {}]
  %s1 = inlined_call_operand.vmem [shape: f32[32,256], index: 1, kind: input, shape index: {}]
  %s2 = inlined_call_operand.vmem [shape: f32[1,256], index: 2, kind: input, shape index: {}]
  %s3 = inlined_call_operand.vmem [shape: f32[128,2], index: 3, kind: input, shape index: {}]
  %s4 = inlined_call_operand.vmem [shape: f32[1,2], index: 4, kind: input, shape index: {}]
  %s5 = inlined_call_operand.vmem [shape: f32[2,32,128], index: 5, kind: input, shape index: {}]
  %s6 = inlined_call_operand.vmem [shape: f32[1,128], index: 6, kind: input, shape index: {}]
  %s7 = inlined_call_operand.hbm [shape: f32[2,128], index: 7, kind: output, shape index: {0}]
  %s8 = inlined_call_operand.hbm [shape: f32[2,2,128], index: 8, kind: output, shape index: {1}]
  %9 = xla_tuple %s7, %s8
  %s10 = sld [smem:[#allocation0]]
  $region46: #{tpu_custom_call.1} parent=0
    _
  %s12 = ssub.s32 1, %s10
  %s13 = scalar_select 0, %s12, %s10
  $region1: #{tpu_custom_call.1} parent=0
    #allocation2 [shape = 'u8[1024]{0}', space=vmem, size = 0x400, scoped, tag = 'output window, operand 0, single buffered']
    #allocation3 [shape = 's32[1]{0}', space=sflag, size = 0x4, scoped, tag = 'scoped memory for tpu_custom_call.1']
    #allocation4 [shape = 'u8[2048]{0}', space=vmem, size = 0x800, scoped, tag = 'output window, operand 1, single buffered']
    #allocation5 [shape = 's32[1]{0}', space=sflag, size = 0x4, scoped, tag = 'scoped memory for tpu_custom_call.1']
    %14 = vsyncpa [#allocation3], 0
    %15 = vsyncpa [#allocation5], 0
    // Predicated region
    $region2: #{tpu_custom_call.1} parent=1 // pred_check
      _
    $region3: #{tpu_custom_call.1} parent=1 // pred_check_branch
      %17 = sbr.rel (0) target = $region5
    $region4: #{tpu_custom_call.1} parent=1 // pred_region
      _
    $region5: #{tpu_custom_call.1} parent=1 // pred_fallthru
      _
    // Predicated region
    $region6: #{tpu_custom_call.1} parent=1 // pred_check
      _
    $region7: #{tpu_custom_call.1} parent=1 // pred_check_branch
      %19 = sbr.rel (0) target = $region9
    $region8: #{tpu_custom_call.1} parent=1 // pred_region
      _
    $region9: #{tpu_custom_call.1} parent=1 // pred_fallthru
      _
    // Predicated region
    $region10: #{tpu_custom_call.1} parent=1 // pred_check
      _
    $region11: #{tpu_custom_call.1} parent=1 // pred_check_branch
      %21 = sbr.rel (0) target = $region13
    $region12: #{tpu_custom_call.1} parent=1 // pred_region
      _
    $region13: #{tpu_custom_call.1} parent=1 // pred_fallthru
      _
    // Predicated region
    $region14: #{tpu_custom_call.1} parent=1 // pred_check
      _
    $region15: #{tpu_custom_call.1} parent=1 // pred_check_branch
      %23 = sbr.rel (0) target = $region17
    $region16: #{tpu_custom_call.1} parent=1 // pred_region
      _
    $region17: #{tpu_custom_call.1} parent=1 // pred_fallthru
      _
    // Predicated region
    $region18: #{tpu_custom_call.1} parent=1 // pred_check
      _
    $region19: #{tpu_custom_call.1} parent=1 // pred_check_branch
      %25 = sbr.rel (0) target = $region21
    $region20: #{tpu_custom_call.1} parent=1 // pred_region
      _
    $region21: #{tpu_custom_call.1} parent=1 // pred_fallthru
      _
    // Predicated region
    $region22: #{tpu_custom_call.1} parent=1 // pred_check
      _
    $region23: #{tpu_custom_call.1} parent=1 // pred_check_branch
      %27 = sbr.rel (0) target = $region25
    $region24: #{tpu_custom_call.1} parent=1 // pred_region
      _
    $region25: #{tpu_custom_call.1} parent=1 // pred_fallthru
      _
    // Predicated region
    $region26: #{tpu_custom_call.1} parent=1 // pred_check
      _
    $region27: #{tpu_custom_call.1} parent=1 // pred_check_branch
      %29 = sbr.rel (0) target = $region29
    $region28: #{tpu_custom_call.1} parent=1 // pred_region
      _
    $region29: #{tpu_custom_call.1} parent=1 // pred_fallthru
      _
    %v30 = vld [vmem:[%s0] sm:$0xff]
    %v31 = vld [vmem:[%s0 + $0x8] sm:$0xff]
    %v32 = vld [vmem:[%s0 + $0x10] sm:$0xff]
    %v33 = vld [vmem:[%s0 + $0x18] sm:$0xff]
    %v34 = vld [vmem:[%s0 + $0x20] sm:$0xff]
    %v35 = vld [vmem:[%s0 + $0x28] sm:$0xff]
    %v36 = vld [vmem:[%s0 + $0x30] sm:$0xff]
    %v37 = vld [vmem:[%s0 + $0x38] sm:$0xff]
    %v38 = vld [vmem:[%s0 + $0x40] sm:$0xff]
    %v39 = vld [vmem:[%s0 + $0x48] sm:$0xff]
    %v40 = vld [vmem:[%s0 + $0x50] sm:$0xff]
    %v41 = vld [vmem:[%s0 + $0x58] sm:$0xff]
    %v42 = vld [vmem:[%s0 + $0x60] sm:$0xff]
    %v43 = vld [vmem:[%s0 + $0x68] sm:$0xff]
    %v44 = vld [vmem:[%s0 + $0x70] sm:$0xff]
    %v45 = vld [vmem:[%s0 + $0x78] sm:$0xff]
    %v46 = vld [vmem:[%s0 + $0x80] sm:$0xff]
    %v47 = vld [vmem:[%s0 + $0x88] sm:$0xff]
    %v48 = vld [vmem:[%s0 + $0x90] sm:$0xff]
    %v49 = vld [vmem:[%s0 + $0x98] sm:$0xff]
    %v50 = vld [vmem:[%s0 + $0xa0] sm:$0xff]
    %v51 = vld [vmem:[%s0 + $0xa8] sm:$0xff]
    %v52 = vld [vmem:[%s0 + $0xb0] sm:$0xff]
    %v53 = vld [vmem:[%s0 + $0xb8] sm:$0xff]
    %v54 = vld [vmem:[%s0 + $0xc0] sm:$0xff]
    %v55 = vld [vmem:[%s0 + $0xc8] sm:$0xff]
    %v56 = vld [vmem:[%s0 + $0xd0] sm:$0xff]
    %v57 = vld [vmem:[%s0 + $0xd8] sm:$0xff]
    %v58 = vld [vmem:[%s0 + $0xe0] sm:$0xff]
    %v59 = vld [vmem:[%s0 + $0xe8] sm:$0xff]
    %v60 = vld [vmem:[%s0 + $0xf0] sm:$0xff]
    %v61 = vld [vmem:[%s0 + $0xf8] sm:$0xff]
    %v62 = vld [vmem:[%s1] sm:$0xff]
    %v63 = vld [vmem:[%s1 + $0x8] sm:$0xff]
    %v64 = vld [vmem:[%s1 + $0x10] sm:$0xff]
    %v65 = vld [vmem:[%s1 + $0x18] sm:$0xff]
    %v66 = vld [vmem:[%s1 + $0x20] sm:$0xff]
    %v67 = vld [vmem:[%s1 + $0x28] sm:$0xff]
    %v68 = vld [vmem:[%s1 + $0x30] sm:$0xff]
    %v69 = vld [vmem:[%s1 + $0x38] sm:$0xff]
    %v70 = vld [vmem:[%s2] sm:$0x3]
    %v72 = vlaneseq
    %v73 = vshrl.u32 %v72, 7
    %v74 = vsub.s32 0, %v73
    %v75 = vrot.slane %v70, %v74
    %v76 = vlaneseq
    %v77 = vshrl.u32 %v76, 7
    %v78 = vsub.s32 1, %v77
    %v79 = vrot.slane %v70, %v78
    %vm82 = vcmask 261120
    %v84 = vsel %vm82, %v30, 0
    %v87 = vsel %vm82, %v31, 0
    %v90 = vsel %vm82, %v32, 0
    %v93 = vsel %vm82, %v33, 0
    %v96 = vsel %vm82, %v34, 0
    %v99 = vsel %vm82, %v35, 0
    %v102 = vsel %vm82, %v36, 0
    %v105 = vsel %vm82, %v37, 0
    %v108 = vsel %vm82, %v38, 0
    %v111 = vsel %vm82, %v39, 0
    %v114 = vsel %vm82, %v40, 0
    %v117 = vsel %vm82, %v41, 0
    %v120 = vsel %vm82, %v42, 0
    %v123 = vsel %vm82, %v43, 0
    %v126 = vsel %vm82, %v44, 0
    %v129 = vsel %vm82, %v45, 0
    %v132 = vsel %vm82, %v46, 0
    %v135 = vsel %vm82, %v47, 0
    %v138 = vsel %vm82, %v48, 0
    %v141 = vsel %vm82, %v49, 0
    %v144 = vsel %vm82, %v50, 0
    %v147 = vsel %vm82, %v51, 0
    %v150 = vsel %vm82, %v52, 0
    %v153 = vsel %vm82, %v53, 0
    %v156 = vsel %vm82, %v54, 0
    %v159 = vsel %vm82, %v55, 0
    %v162 = vsel %vm82, %v56, 0
    %v165 = vsel %vm82, %v57, 0
    %v168 = vsel %vm82, %v58, 0
    %v171 = vsel %vm82, %v59, 0
    %v174 = vsel %vm82, %v60, 0
    %v177 = vsel %vm82, %v61, 0
    %179 = vmatprep.subr.mxu0 0.0
    %180 = vmatpush1.msra.mxu0 0.0
    %181 = vmatprep.subr.mxu0 0.0
    %182 = vmatpush1.msra.mxu0 0.0
    %183 = vmatprep.subr.mxu0 0.0
    %184 = vmatpush1.msra.mxu0 0.0
    %185 = vmatprep.subr.mxu0 0.0
    %186 = vmatpush1.msra.mxu0 0.0
    %187 = vmatprep.subr.mxu0 0.0
    %188 = vmatpush1.msra.mxu0 0.0
    %189 = vmatprep.subr.mxu0 0.0
    %190 = vmatpush1.msra.mxu0 0.0
    %191 = vmatprep.subr.mxu0 0.0
    %192 = vmatpush1.msra.mxu0 0.0
    %193 = vmatprep.subr.mxu0 0.0
    %194 = vmatpush1.msra.mxu0 0.0
    %195 = vmatprep.subr.mxu0 0.0
    %196 = vmatpush1.msra.mxu0 0.0
    %197 = vmatprep.subr.mxu0 0.0
    %198 = vmatpush1.msra.mxu0 0.0
    %199 = vmatprep.subr.mxu0 0.0
    %200 = vmatpush1.msra.mxu0 0.0
    %201 = vmatprep.subr.mxu0 0.0
    %202 = vmatpush1.msra.mxu0 0.0
    %203 = vmatprep.subr.mxu0 %v69
    %204 = vmatpush1.msra.mxu0 %v68
    %205 = vmatprep.subr.mxu0 %v67
    %206 = vmatpush1.msra.mxu0 %v66
    %207 = vmatprep.subr.mxu0 %v65
    %208 = vmatpush1.msra.mxu0 %v64
    %209 = vmatprep.subr.mxu0 %v63
    %210 = vmatpush1.msra.mxu0 %v62
    %211 = vmatprep.subr.mxu0 0.0
    %212 = vmatpush2.msra.mxu0 0.0
    %213 = vmatprep.subr.mxu0 0.0
    %214 = vmatpush2.msra.mxu0 0.0
    %215 = vmatprep.subr.mxu0 0.0
    %216 = vmatpush2.msra.mxu0 0.0
    %217 = vmatprep.subr.mxu0 0.0
    %218 = vmatpush2.msra.mxu0 0.0
    %219 = vmatprep.subr.mxu0 0.0
    %220 = vmatpush2.msra.mxu0 0.0
    %221 = vmatprep.subr.mxu0 0.0
    %222 = vmatpush2.msra.mxu0 0.0
    %223 = vmatprep.subr.mxu0 0.0
    %224 = vmatpush2.msra.mxu0 0.0
    %225 = vmatprep.subr.mxu0 0.0
    %226 = vmatpush2.msra.mxu0 0.0
    %227 = vmatprep.subr.mxu0 0.0
    %228 = vmatpush2.msra.mxu0 0.0
    %229 = vmatprep.subr.mxu0 0.0
    %230 = vmatpush2.msra.mxu0 0.0
    %231 = vmatprep.subr.mxu0 0.0
    %232 = vmatpush2.msra.mxu0 0.0
    %233 = vmatprep.subr.mxu0 0.0
    %234 = vmatpush2.msra.mxu0 0.0
    %235 = vmatprep.subr.mxu0 0.0
    %236 = vmatpush2.msra.mxu0 0.0
    %237 = vmatprep.subr.mxu0 0.0
    %238 = vmatpush2.msra.mxu0 0.0
    %239 = vmatprep.subr.mxu0 0.0
    %240 = vmatpush2.msra.mxu0 0.0
    %241 = vmatprep.subr.mxu0 0.0
    %242 = vmatpush2.msra.mxu0 0.0
    %243 = vmatprep.mubr.f32.mxu0 0.0
    %244 = vmatmul.mubr.f32.gmra.mxu0 %v84
    %v245 = vpop.f32.mrf.mxu0
    %v246 = vadd.f32 %v75, %v245
    %v247 = vpop.f32.mrf.mxu0
    %v248 = vadd.f32 %v79, %v247
    %249 = vmatprep.mubr.f32.mxu0 0.0
    %250 = vmatmul.mubr.f32.gmra.mxu0 %v87
    %v251 = vpop.f32.mrf.mxu0
    %v252 = vadd.f32 %v75, %v251
    %v253 = vpop.f32.mrf.mxu0
    %v254 = vadd.f32 %v79, %v253
    %255 = vmatprep.mubr.f32.mxu0 0.0
    %256 = vmatmul.mubr.f32.gmra.mxu0 %v90
    %v257 = vpop.f32.mrf.mxu0
    %v258 = vadd.f32 %v75, %v257
    %v259 = vpop.f32.mrf.mxu0
    %v260 = vadd.f32 %v79, %v259
    %261 = vmatprep.mubr.f32.mxu0 0.0
    %262 = vmatmul.mubr.f32.gmra.mxu0 %v93
    %v263 = vpop.f32.mrf.mxu0
    %v264 = vadd.f32 %v75, %v263
    %v265 = vpop.f32.mrf.mxu0
    %v266 = vadd.f32 %v79, %v265
    %267 = vmatprep.mubr.f32.mxu0 0.0
    %268 = vmatmul.mubr.f32.gmra.mxu0 %v96
    %v269 = vpop.f32.mrf.mxu0
    %v270 = vadd.f32 %v75, %v269
    %v271 = vpop.f32.mrf.mxu0
    %v272 = vadd.f32 %v79, %v271
    %273 = vmatprep.mubr.f32.mxu0 0.0
    %274 = vmatmul.mubr.f32.gmra.mxu0 %v99
    %v275 = vpop.f32.mrf.mxu0
    %v276 = vadd.f32 %v75, %v275
    %v277 = vpop.f32.mrf.mxu0
    %v278 = vadd.f32 %v79, %v277
    %279 = vmatprep.mubr.f32.mxu0 0.0
    %280 = vmatmul.mubr.f32.gmra.mxu0 %v102
    %v281 = vpop.f32.mrf.mxu0
    %v282 = vadd.f32 %v75, %v281
    %v283 = vpop.f32.mrf.mxu0
    %v284 = vadd.f32 %v79, %v283
    %285 = vmatprep.mubr.f32.mxu0 0.0
    %286 = vmatmul.mubr.f32.gmra.mxu0 %v105
    %v287 = vpop.f32.mrf.mxu0
    %v288 = vadd.f32 %v75, %v287
    %v289 = vpop.f32.mrf.mxu0
    %v290 = vadd.f32 %v79, %v289
    %291 = vmatprep.mubr.f32.mxu0 0.0
    %292 = vmatmul.mubr.f32.gmra.mxu0 %v108
    %v293 = vpop.f32.mrf.mxu0
    %v294 = vadd.f32 %v75, %v293
    %v295 = vpop.f32.mrf.mxu0
    %v296 = vadd.f32 %v79, %v295
    %297 = vmatprep.mubr.f32.mxu0 0.0
    %298 = vmatmul.mubr.f32.gmra.mxu0 %v111
    %v299 = vpop.f32.mrf.mxu0
    %v300 = vadd.f32 %v75, %v299
    %v301 = vpop.f32.mrf.mxu0
    %v302 = vadd.f32 %v79, %v301
    %303 = vmatprep.mubr.f32.mxu0 0.0
    %304 = vmatmul.mubr.f32.gmra.mxu0 %v114
    %v305 = vpop.f32.mrf.mxu0
    %v306 = vadd.f32 %v75, %v305
    %v307 = vpop.f32.mrf.mxu0
    %v308 = vadd.f32 %v79, %v307
    %309 = vmatprep.mubr.f32.mxu0 0.0
    %310 = vmatmul.mubr.f32.gmra.mxu0 %v117
    %v311 = vpop.f32.mrf.mxu0
    %v312 = vadd.f32 %v75, %v311
    %v313 = vpop.f32.mrf.mxu0
    %v314 = vadd.f32 %v79, %v313
    %315 = vmatprep.mubr.f32.mxu0 0.0
    %316 = vmatmul.mubr.f32.gmra.mxu0 %v120
    %v317 = vpop.f32.mrf.mxu0
    %v318 = vadd.f32 %v75, %v317
    %v319 = vpop.f32.mrf.mxu0
    %v320 = vadd.f32 %v79, %v319
    %321 = vmatprep.mubr.f32.mxu0 0.0
    %322 = vmatmul.mubr.f32.gmra.mxu0 %v123
    %v323 = vpop.f32.mrf.mxu0
    %v324 = vadd.f32 %v75, %v323
    %v325 = vpop.f32.mrf.mxu0
    %v326 = vadd.f32 %v79, %v325
    %327 = vmatprep.mubr.f32.mxu0 0.0
    %328 = vmatmul.mubr.f32.gmra.mxu0 %v126
    %v329 = vpop.f32.mrf.mxu0
    %v330 = vadd.f32 %v75, %v329
    %v331 = vpop.f32.mrf.mxu0
    %v332 = vadd.f32 %v79, %v331
    %333 = vmatprep.mubr.f32.mxu0 0.0
    %334 = vmatmul.mubr.f32.gmra.mxu0 %v129
    %v335 = vpop.f32.mrf.mxu0
    %v336 = vadd.f32 %v75, %v335
    %v337 = vpop.f32.mrf.mxu0
    %v338 = vadd.f32 %v79, %v337
    %339 = vmatprep.mubr.f32.mxu0 0.0
    %340 = vmatmul.mubr.f32.gmra.mxu0 %v132
    %v341 = vpop.f32.mrf.mxu0
    %v342 = vadd.f32 %v75, %v341
    %v343 = vpop.f32.mrf.mxu0
    %v344 = vadd.f32 %v79, %v343
    %345 = vmatprep.mubr.f32.mxu0 0.0
    %346 = vmatmul.mubr.f32.gmra.mxu0 %v135
    %v347 = vpop.f32.mrf.mxu0
    %v348 = vadd.f32 %v75, %v347
    %v349 = vpop.f32.mrf.mxu0
    %v350 = vadd.f32 %v79, %v349
    %351 = vmatprep.mubr.f32.mxu0 0.0
    %352 = vmatmul.mubr.f32.gmra.mxu0 %v138
    %v353 = vpop.f32.mrf.mxu0
    %v354 = vadd.f32 %v75, %v353
    %v355 = vpop.f32.mrf.mxu0
    %v356 = vadd.f32 %v79, %v355
    %357 = vmatprep.mubr.f32.mxu0 0.0
    %358 = vmatmul.mubr.f32.gmra.mxu0 %v141
    %v359 = vpop.f32.mrf.mxu0
    %v360 = vadd.f32 %v75, %v359
    %v361 = vpop.f32.mrf.mxu0
    %v362 = vadd.f32 %v79, %v361
    %363 = vmatprep.mubr.f32.mxu0 0.0
    %364 = vmatmul.mubr.f32.gmra.mxu0 %v144
    %v365 = vpop.f32.mrf.mxu0
    %v366 = vadd.f32 %v75, %v365
    %v367 = vpop.f32.mrf.mxu0
    %v368 = vadd.f32 %v79, %v367
    %369 = vmatprep.mubr.f32.mxu0 0.0
    %370 = vmatmul.mubr.f32.gmra.mxu0 %v147
    %v371 = vpop.f32.mrf.mxu0
    %v372 = vadd.f32 %v75, %v371
    %v373 = vpop.f32.mrf.mxu0
    %v374 = vadd.f32 %v79, %v373
    %375 = vmatprep.mubr.f32.mxu0 0.0
    %376 = vmatmul.mubr.f32.gmra.mxu0 %v150
    %v377 = vpop.f32.mrf.mxu0
    %v378 = vadd.f32 %v75, %v377
    %v379 = vpop.f32.mrf.mxu0
    %v380 = vadd.f32 %v79, %v379
    %381 = vmatprep.mubr.f32.mxu0 0.0
    %382 = vmatmul.mubr.f32.gmra.mxu0 %v153
    %v383 = vpop.f32.mrf.mxu0
    %v384 = vadd.f32 %v75, %v383
    %v385 = vpop.f32.mrf.mxu0
    %v386 = vadd.f32 %v79, %v385
    %387 = vmatprep.mubr.f32.mxu0 0.0
    %388 = vmatmul.mubr.f32.gmra.mxu0 %v156
    %v389 = vpop.f32.mrf.mxu0
    %v390 = vadd.f32 %v75, %v389
    %v391 = vpop.f32.mrf.mxu0
    %v392 = vadd.f32 %v79, %v391
    %393 = vmatprep.mubr.f32.mxu0 0.0
    %394 = vmatmul.mubr.f32.gmra.mxu0 %v159
    %v395 = vpop.f32.mrf.mxu0
    %v396 = vadd.f32 %v75, %v395
    %v397 = vpop.f32.mrf.mxu0
    %v398 = vadd.f32 %v79, %v397
    %399 = vmatprep.mubr.f32.mxu0 0.0
    %400 = vmatmul.mubr.f32.gmra.mxu0 %v162
    %v401 = vpop.f32.mrf.mxu0
    %v402 = vadd.f32 %v75, %v401
    %v403 = vpop.f32.mrf.mxu0
    %v404 = vadd.f32 %v79, %v403
    %405 = vmatprep.mubr.f32.mxu0 0.0
    %406 = vmatmul.mubr.f32.gmra.mxu0 %v165
    %v407 = vpop.f32.mrf.mxu0
    %v408 = vadd.f32 %v75, %v407
    %v409 = vpop.f32.mrf.mxu0
    %v410 = vadd.f32 %v79, %v409
    %411 = vmatprep.mubr.f32.mxu0 0.0
    %412 = vmatmul.mubr.f32.gmra.mxu0 %v168
    %v413 = vpop.f32.mrf.mxu0
    %v414 = vadd.f32 %v75, %v413
    %v415 = vpop.f32.mrf.mxu0
    %v416 = vadd.f32 %v79, %v415
    %417 = vmatprep.mubr.f32.mxu0 0.0
    %418 = vmatmul.mubr.f32.gmra.mxu0 %v171
    %v419 = vpop.f32.mrf.mxu0
    %v420 = vadd.f32 %v75, %v419
    %v421 = vpop.f32.mrf.mxu0
    %v422 = vadd.f32 %v79, %v421
    %423 = vmatprep.mubr.f32.mxu0 0.0
    %424 = vmatmul.mubr.f32.gmra.mxu0 %v174
    %v425 = vpop.f32.mrf.mxu0
    %v426 = vadd.f32 %v75, %v425
    %v427 = vpop.f32.mrf.mxu0
    %v428 = vadd.f32 %v79, %v427
    %429 = vmatprep.mubr.f32.mxu0 0.0
    %430 = vmatmul.mubr.f32.gmra.mxu0 %v177
    %v431 = vpop.f32.mrf.mxu0
    %v432 = vadd.f32 %v75, %v431
    %v433 = vpop.f32.mrf.mxu0
    %v434 = vadd.f32 %v79, %v433
    %435 = vdwg.mxu0
    %v436 = vtanh.pop %v246
    %v437 = vtanh.pop %v252
    %v438 = vtanh.pop %v258
    %v439 = vtanh.pop %v264
    %v440 = vtanh.pop %v270
    %v441 = vtanh.pop %v276
    %v442 = vtanh.pop %v282
    %v443 = vtanh.pop %v288
    %v444 = vtanh.pop %v294
    %v445 = vtanh.pop %v300
    %v446 = vtanh.pop %v306
    %v447 = vtanh.pop %v312
    %v448 = vtanh.pop %v318
    %v449 = vtanh.pop %v324
    %v450 = vtanh.pop %v330
    %v451 = vtanh.pop %v336
    %v452 = vtanh.pop %v342
    %v453 = vtanh.pop %v348
    %v454 = vtanh.pop %v354
    %v455 = vtanh.pop %v360
    %v456 = vtanh.pop %v366
    %v457 = vtanh.pop %v372
    %v458 = vtanh.pop %v378
    %v459 = vtanh.pop %v384
    %v460 = vtanh.pop %v390
    %v461 = vtanh.pop %v396
    %v462 = vtanh.pop %v402
    %v463 = vtanh.pop %v408
    %v464 = vtanh.pop %v414
    %v465 = vtanh.pop %v420
    %v466 = vtanh.pop %v426
    %v467 = vtanh.pop %v432
    %v468 = vmul.f32 %v248, 0.5
    %v469 = vmul.f32 %v254, 0.5
    %v470 = vmul.f32 %v260, 0.5
    %v471 = vmul.f32 %v266, 0.5
    %v472 = vmul.f32 %v272, 0.5
    %v473 = vmul.f32 %v278, 0.5
    %v474 = vmul.f32 %v284, 0.5
    %v475 = vmul.f32 %v290, 0.5
    %v476 = vmul.f32 %v296, 0.5
    %v477 = vmul.f32 %v302, 0.5
    %v478 = vmul.f32 %v308, 0.5
    %v479 = vmul.f32 %v314, 0.5
    %v480 = vmul.f32 %v320, 0.5
    %v481 = vmul.f32 %v326, 0.5
    %v482 = vmul.f32 %v332, 0.5
    %v483 = vmul.f32 %v338, 0.5
    %v484 = vmul.f32 %v344, 0.5
    %v485 = vmul.f32 %v350, 0.5
    %v486 = vmul.f32 %v356, 0.5
    %v487 = vmul.f32 %v362, 0.5
    %v488 = vmul.f32 %v368, 0.5
    %v489 = vmul.f32 %v374, 0.5
    %v490 = vmul.f32 %v380, 0.5
    %v491 = vmul.f32 %v386, 0.5
    %v492 = vmul.f32 %v392, 0.5
    %v493 = vmul.f32 %v398, 0.5
    %v494 = vmul.f32 %v404, 0.5
    %v495 = vmul.f32 %v410, 0.5
    %v496 = vmul.f32 %v416, 0.5
    %v497 = vmul.f32 %v422, 0.5
    %v498 = vmul.f32 %v428, 0.5
    %v499 = vmul.f32 %v434, 0.5
    %v500 = vmul.f32 %v248, 0.70710677
    %v501 = vmul.f32 %v254, 0.70710677
    %v502 = vmul.f32 %v260, 0.70710677
    %v503 = vmul.f32 %v266, 0.70710677
    %v504 = vmul.f32 %v272, 0.70710677
    %v505 = vmul.f32 %v278, 0.70710677
    %v506 = vmul.f32 %v284, 0.70710677
    %v507 = vmul.f32 %v290, 0.70710677
    %v508 = vmul.f32 %v296, 0.70710677
    %v509 = vmul.f32 %v302, 0.70710677
    %v510 = vmul.f32 %v308, 0.70710677
    %v511 = vmul.f32 %v314, 0.70710677
    %v512 = vmul.f32 %v320, 0.70710677
    %v513 = vmul.f32 %v326, 0.70710677
    %v514 = vmul.f32 %v332, 0.70710677
    %v515 = vmul.f32 %v338, 0.70710677
    %v516 = vmul.f32 %v344, 0.70710677
    %v517 = vmul.f32 %v350, 0.70710677
    %v518 = vmul.f32 %v356, 0.70710677
    %v519 = vmul.f32 %v362, 0.70710677
    %v520 = vmul.f32 %v368, 0.70710677
    %v521 = vmul.f32 %v374, 0.70710677
    %v522 = vmul.f32 %v380, 0.70710677
    %v523 = vmul.f32 %v386, 0.70710677
    %v524 = vmul.f32 %v392, 0.70710677
    %v525 = vmul.f32 %v398, 0.70710677
    %v526 = vmul.f32 %v404, 0.70710677
    %v527 = vmul.f32 %v410, 0.70710677
    %v528 = vmul.f32 %v416, 0.70710677
    %v529 = vmul.f32 %v422, 0.70710677
    %v530 = vmul.f32 %v428, 0.70710677
    %v531 = vmul.f32 %v434, 0.70710677
    %v532 = verf.f32.pop %v500
    %v533 = verf.f32.pop %v501
    %v534 = verf.f32.pop %v502
    %v535 = verf.f32.pop %v503
    %v536 = verf.f32.pop %v504
    %v537 = verf.f32.pop %v505
    %v538 = verf.f32.pop %v506
    %v539 = verf.f32.pop %v507
    %v540 = verf.f32.pop %v508
    %v541 = verf.f32.pop %v509
    %v542 = verf.f32.pop %v510
    %v543 = verf.f32.pop %v511
    %v544 = verf.f32.pop %v512
    %v545 = verf.f32.pop %v513
    %v546 = verf.f32.pop %v514
    %v547 = verf.f32.pop %v515
    %v548 = verf.f32.pop %v516
    %v549 = verf.f32.pop %v517
    %v550 = verf.f32.pop %v518
    %v551 = verf.f32.pop %v519
    %v552 = verf.f32.pop %v520
    %v553 = verf.f32.pop %v521
    %v554 = verf.f32.pop %v522
    %v555 = verf.f32.pop %v523
    %v556 = verf.f32.pop %v524
    %v557 = verf.f32.pop %v525
    %v558 = verf.f32.pop %v526
    %v559 = verf.f32.pop %v527
    %v560 = verf.f32.pop %v528
    %v561 = verf.f32.pop %v529
    %v562 = verf.f32.pop %v530
    %v563 = verf.f32.pop %v531
    %v564 = vadd.f32 %v532, 1.0
    %v565 = vadd.f32 %v533, 1.0
    %v566 = vadd.f32 %v534, 1.0
    %v567 = vadd.f32 %v535, 1.0
    %v568 = vadd.f32 %v536, 1.0
    %v569 = vadd.f32 %v537, 1.0
    %v570 = vadd.f32 %v538, 1.0
    %v571 = vadd.f32 %v539, 1.0
    %v572 = vadd.f32 %v540, 1.0
    %v573 = vadd.f32 %v541, 1.0
    %v574 = vadd.f32 %v542, 1.0
    %v575 = vadd.f32 %v543, 1.0
    %v576 = vadd.f32 %v544, 1.0
    %v577 = vadd.f32 %v545, 1.0
    %v578 = vadd.f32 %v546, 1.0
    %v579 = vadd.f32 %v547, 1.0
    %v580 = vadd.f32 %v548, 1.0
    %v581 = vadd.f32 %v549, 1.0
    %v582 = vadd.f32 %v550, 1.0
    %v583 = vadd.f32 %v551, 1.0
    %v584 = vadd.f32 %v552, 1.0
    %v585 = vadd.f32 %v553, 1.0
    %v586 = vadd.f32 %v554, 1.0
    %v587 = vadd.f32 %v555, 1.0
    %v588 = vadd.f32 %v556, 1.0
    %v589 = vadd.f32 %v557, 1.0
    %v590 = vadd.f32 %v558, 1.0
    %v591 = vadd.f32 %v559, 1.0
    %v592 = vadd.f32 %v560, 1.0
    %v593 = vadd.f32 %v561, 1.0
    %v594 = vadd.f32 %v562, 1.0
    %v595 = vadd.f32 %v563, 1.0
    %v596 = vmul.f32 %v468, %v564
    %v597 = vmul.f32 %v469, %v565
    %v598 = vmul.f32 %v470, %v566
    %v599 = vmul.f32 %v471, %v567
    %v600 = vmul.f32 %v472, %v568
    %v601 = vmul.f32 %v473, %v569
    %v602 = vmul.f32 %v474, %v570
    %v603 = vmul.f32 %v475, %v571
    %v604 = vmul.f32 %v476, %v572
    %v605 = vmul.f32 %v477, %v573
    %v606 = vmul.f32 %v478, %v574
    %v607 = vmul.f32 %v479, %v575
    %v608 = vmul.f32 %v480, %v576
    %v609 = vmul.f32 %v481, %v577
    %v610 = vmul.f32 %v482, %v578
    %v611 = vmul.f32 %v483, %v579
    %v612 = vmul.f32 %v484, %v580
    %v613 = vmul.f32 %v485, %v581
    %v614 = vmul.f32 %v486, %v582
    %v615 = vmul.f32 %v487, %v583
    %v616 = vmul.f32 %v488, %v584
    %v617 = vmul.f32 %v489, %v585
    %v618 = vmul.f32 %v490, %v586
    %v619 = vmul.f32 %v491, %v587
    %v620 = vmul.f32 %v492, %v588
    %v621 = vmul.f32 %v493, %v589
    %v622 = vmul.f32 %v494, %v590
    %v623 = vmul.f32 %v495, %v591
    %v624 = vmul.f32 %v496, %v592
    %v625 = vmul.f32 %v497, %v593
    %v626 = vmul.f32 %v498, %v594
    %v627 = vmul.f32 %v499, %v595
    %v628 = vmul.f32 %v436, %v596
    %v629 = vmul.f32 %v437, %v597
    %v630 = vmul.f32 %v438, %v598
    %v631 = vmul.f32 %v439, %v599
    %v632 = vmul.f32 %v440, %v600
    %v633 = vmul.f32 %v441, %v601
    %v634 = vmul.f32 %v442, %v602
    %v635 = vmul.f32 %v443, %v603
    %v636 = vmul.f32 %v444, %v604
    %v637 = vmul.f32 %v445, %v605
    %v638 = vmul.f32 %v446, %v606
    %v639 = vmul.f32 %v447, %v607
    %v640 = vmul.f32 %v448, %v608
    %v641 = vmul.f32 %v449, %v609
    %v642 = vmul.f32 %v450, %v610
    %v643 = vmul.f32 %v451, %v611
    %v644 = vmul.f32 %v452, %v612
    %v645 = vmul.f32 %v453, %v613
    %v646 = vmul.f32 %v454, %v614
    %v647 = vmul.f32 %v455, %v615
    %v648 = vmul.f32 %v456, %v616
    %v649 = vmul.f32 %v457, %v617
    %v650 = vmul.f32 %v458, %v618
    %v651 = vmul.f32 %v459, %v619
    %v652 = vmul.f32 %v460, %v620
    %v653 = vmul.f32 %v461, %v621
    %v654 = vmul.f32 %v462, %v622
    %v655 = vmul.f32 %v463, %v623
    %v656 = vmul.f32 %v464, %v624
    %v657 = vmul.f32 %v465, %v625
    %v658 = vmul.f32 %v466, %v626
    %v659 = vmul.f32 %v467, %v627
    %v660 = vld [vmem:[%s3] sm:$0xff]
    %v661 = vld [vmem:[%s3 + $0x8] sm:$0xff]
    %v662 = vld [vmem:[%s3 + $0x10] sm:$0xff]
    %v663 = vld [vmem:[%s3 + $0x18] sm:$0xff]
    %v664 = vld [vmem:[%s3 + $0x20] sm:$0xff]
    %v665 = vld [vmem:[%s3 + $0x28] sm:$0xff]
    %v666 = vld [vmem:[%s3 + $0x30] sm:$0xff]
    %v667 = vld [vmem:[%s3 + $0x38] sm:$0xff]
    %v668 = vld [vmem:[%s3 + $0x40] sm:$0xff]
    %v669 = vld [vmem:[%s3 + $0x48] sm:$0xff]
    %v670 = vld [vmem:[%s3 + $0x50] sm:$0xff]
    %v671 = vld [vmem:[%s3 + $0x58] sm:$0xff]
    %v672 = vld [vmem:[%s3 + $0x60] sm:$0xff]
    %v673 = vld [vmem:[%s3 + $0x68] sm:$0xff]
    %v674 = vld [vmem:[%s3 + $0x70] sm:$0xff]
    %v675 = vld [vmem:[%s3 + $0x78] sm:$0xff]
    %v676 = vld [vmem:[%s4] sm:$0x1]
    %v678 = vlaneseq
    %v679 = vshrl.u32 %v678, 7
    %v680 = vsub.s32 0, %v679
    %v681 = vrot.slane %v676, %v680
    %683 = vmatprep.subr.mxu0 0.0
    %684 = vmatpush1.msra.mxu0 %v675
    %685 = vmatprep.subr.mxu0 0.0
    %686 = vmatpush1.msra.mxu0 %v674
    %687 = vmatprep.subr.mxu0 0.0
    %688 = vmatpush1.msra.mxu0 %v673
    %689 = vmatprep.subr.mxu0 0.0
    %690 = vmatpush1.msra.mxu0 %v672
    %691 = vmatprep.subr.mxu0 0.0
    %692 = vmatpush1.msra.mxu0 %v671
    %693 = vmatprep.subr.mxu0 0.0
    %694 = vmatpush1.msra.mxu0 %v670
    %695 = vmatprep.subr.mxu0 0.0
    %696 = vmatpush1.msra.mxu0 %v669
    %697 = vmatprep.subr.mxu0 0.0
    %698 = vmatpush1.msra.mxu0 %v668
    %699 = vmatprep.subr.mxu0 0.0
    %700 = vmatpush1.msra.mxu0 %v667
    %701 = vmatprep.subr.mxu0 0.0
    %702 = vmatpush1.msra.mxu0 %v666
    %703 = vmatprep.subr.mxu0 0.0
    %704 = vmatpush1.msra.mxu0 %v665
    %705 = vmatprep.subr.mxu0 0.0
    %706 = vmatpush1.msra.mxu0 %v664
    %707 = vmatprep.subr.mxu0 0.0
    %708 = vmatpush1.msra.mxu0 %v663
    %709 = vmatprep.subr.mxu0 0.0
    %710 = vmatpush1.msra.mxu0 %v662
    %711 = vmatprep.subr.mxu0 0.0
    %712 = vmatpush1.msra.mxu0 %v661
    %713 = vmatprep.subr.mxu0 0.0
    %714 = vmatpush1.msra.mxu0 %v660
    %715 = vmatprep.subr.mxu0 0.0
    %716 = vmatpush2.msra.mxu0 0.0
    %717 = vmatprep.subr.mxu0 0.0
    %718 = vmatpush2.msra.mxu0 0.0
    %719 = vmatprep.subr.mxu0 0.0
    %720 = vmatpush2.msra.mxu0 0.0
    %721 = vmatprep.subr.mxu0 0.0
    %722 = vmatpush2.msra.mxu0 0.0
    %723 = vmatprep.subr.mxu0 0.0
    %724 = vmatpush2.msra.mxu0 0.0
    %725 = vmatprep.subr.mxu0 0.0
    %726 = vmatpush2.msra.mxu0 0.0
    %727 = vmatprep.subr.mxu0 0.0
    %728 = vmatpush2.msra.mxu0 0.0
    %729 = vmatprep.subr.mxu0 0.0
    %730 = vmatpush2.msra.mxu0 0.0
    %731 = vmatprep.subr.mxu0 0.0
    %732 = vmatpush2.msra.mxu0 0.0
    %733 = vmatprep.subr.mxu0 0.0
    %734 = vmatpush2.msra.mxu0 0.0
    %735 = vmatprep.subr.mxu0 0.0
    %736 = vmatpush2.msra.mxu0 0.0
    %737 = vmatprep.subr.mxu0 0.0
    %738 = vmatpush2.msra.mxu0 0.0
    %739 = vmatprep.subr.mxu0 0.0
    %740 = vmatpush2.msra.mxu0 0.0
    %741 = vmatprep.subr.mxu0 0.0
    %742 = vmatpush2.msra.mxu0 0.0
    %743 = vmatprep.subr.mxu0 0.0
    %744 = vmatpush2.msra.mxu0 0.0
    %745 = vmatprep.subr.mxu0 0.0
    %746 = vmatpush2.msra.mxu0 0.0
    %747 = vmatprep.mubr.f32.mxu0 0.0
    %748 = vmatmul.mubr.f32.gmra.mxu0 %v628
    %v749 = vpop.f32.mrf.mxu0
    %v750 = vadd.f32 %v681, %v749
    %v751 = vpop.f32.mrf.mxu0
    %752 = vmatprep.mubr.f32.mxu0 0.0
    %753 = vmatmul.mubr.f32.gmra.mxu0 %v629
    %v754 = vpop.f32.mrf.mxu0
    %v755 = vadd.f32 %v681, %v754
    %v756 = vpop.f32.mrf.mxu0
    %757 = vmatprep.mubr.f32.mxu0 0.0
    %758 = vmatmul.mubr.f32.gmra.mxu0 %v630
    %v759 = vpop.f32.mrf.mxu0
    %v760 = vadd.f32 %v681, %v759
    %v761 = vpop.f32.mrf.mxu0
    %762 = vmatprep.mubr.f32.mxu0 0.0
    %763 = vmatmul.mubr.f32.gmra.mxu0 %v631
    %v764 = vpop.f32.mrf.mxu0
    %v765 = vadd.f32 %v681, %v764
    %v766 = vpop.f32.mrf.mxu0
    %767 = vmatprep.mubr.f32.mxu0 0.0
    %768 = vmatmul.mubr.f32.gmra.mxu0 %v632
    %v769 = vpop.f32.mrf.mxu0
    %v770 = vadd.f32 %v681, %v769
    %v771 = vpop.f32.mrf.mxu0
    %772 = vmatprep.mubr.f32.mxu0 0.0
    %773 = vmatmul.mubr.f32.gmra.mxu0 %v633
    %v774 = vpop.f32.mrf.mxu0
    %v775 = vadd.f32 %v681, %v774
    %v776 = vpop.f32.mrf.mxu0
    %777 = vmatprep.mubr.f32.mxu0 0.0
    %778 = vmatmul.mubr.f32.gmra.mxu0 %v634
    %v779 = vpop.f32.mrf.mxu0
    %v780 = vadd.f32 %v681, %v779
    %v781 = vpop.f32.mrf.mxu0
    %782 = vmatprep.mubr.f32.mxu0 0.0
    %783 = vmatmul.mubr.f32.gmra.mxu0 %v635
    %v784 = vpop.f32.mrf.mxu0
    %v785 = vadd.f32 %v681, %v784
    %v786 = vpop.f32.mrf.mxu0
    %787 = vmatprep.mubr.f32.mxu0 0.0
    %788 = vmatmul.mubr.f32.gmra.mxu0 %v636
    %v789 = vpop.f32.mrf.mxu0
    %v790 = vadd.f32 %v681, %v789
    %v791 = vpop.f32.mrf.mxu0
    %792 = vmatprep.mubr.f32.mxu0 0.0
    %793 = vmatmul.mubr.f32.gmra.mxu0 %v637
    %v794 = vpop.f32.mrf.mxu0
    %v795 = vadd.f32 %v681, %v794
    %v796 = vpop.f32.mrf.mxu0
    %797 = vmatprep.mubr.f32.mxu0 0.0
    %798 = vmatmul.mubr.f32.gmra.mxu0 %v638
    %v799 = vpop.f32.mrf.mxu0
    %v800 = vadd.f32 %v681, %v799
    %v801 = vpop.f32.mrf.mxu0
    %802 = vmatprep.mubr.f32.mxu0 0.0
    %803 = vmatmul.mubr.f32.gmra.mxu0 %v639
    %v804 = vpop.f32.mrf.mxu0
    %v805 = vadd.f32 %v681, %v804
    %v806 = vpop.f32.mrf.mxu0
    %807 = vmatprep.mubr.f32.mxu0 0.0
    %808 = vmatmul.mubr.f32.gmra.mxu0 %v640
    %v809 = vpop.f32.mrf.mxu0
    %v810 = vadd.f32 %v681, %v809
    %v811 = vpop.f32.mrf.mxu0
    %812 = vmatprep.mubr.f32.mxu0 0.0
    %813 = vmatmul.mubr.f32.gmra.mxu0 %v641
    %v814 = vpop.f32.mrf.mxu0
    %v815 = vadd.f32 %v681, %v814
    %v816 = vpop.f32.mrf.mxu0
    %817 = vmatprep.mubr.f32.mxu0 0.0
    %818 = vmatmul.mubr.f32.gmra.mxu0 %v642
    %v819 = vpop.f32.mrf.mxu0
    %v820 = vadd.f32 %v681, %v819
    %v821 = vpop.f32.mrf.mxu0
    %822 = vmatprep.mubr.f32.mxu0 0.0
    %823 = vmatmul.mubr.f32.gmra.mxu0 %v643
    %v824 = vpop.f32.mrf.mxu0
    %v825 = vadd.f32 %v681, %v824
    %v826 = vpop.f32.mrf.mxu0
    %827 = vmatprep.mubr.f32.mxu0 0.0
    %828 = vmatmul.mubr.f32.gmra.mxu0 %v644
    %v829 = vpop.f32.mrf.mxu0
    %v830 = vadd.f32 %v681, %v829
    %v831 = vpop.f32.mrf.mxu0
    %832 = vmatprep.mubr.f32.mxu0 0.0
    %833 = vmatmul.mubr.f32.gmra.mxu0 %v645
    %v834 = vpop.f32.mrf.mxu0
    %v835 = vadd.f32 %v681, %v834
    %v836 = vpop.f32.mrf.mxu0
    %837 = vmatprep.mubr.f32.mxu0 0.0
    %838 = vmatmul.mubr.f32.gmra.mxu0 %v646
    %v839 = vpop.f32.mrf.mxu0
    %v840 = vadd.f32 %v681, %v839
    %v841 = vpop.f32.mrf.mxu0
    %842 = vmatprep.mubr.f32.mxu0 0.0
    %843 = vmatmul.mubr.f32.gmra.mxu0 %v647
    %v844 = vpop.f32.mrf.mxu0
    %v845 = vadd.f32 %v681, %v844
    %v846 = vpop.f32.mrf.mxu0
    %847 = vmatprep.mubr.f32.mxu0 0.0
    %848 = vmatmul.mubr.f32.gmra.mxu0 %v648
    %v849 = vpop.f32.mrf.mxu0
    %v850 = vadd.f32 %v681, %v849
    %v851 = vpop.f32.mrf.mxu0
    %852 = vmatprep.mubr.f32.mxu0 0.0
    %853 = vmatmul.mubr.f32.gmra.mxu0 %v649
    %v854 = vpop.f32.mrf.mxu0
    %v855 = vadd.f32 %v681, %v854
    %v856 = vpop.f32.mrf.mxu0
    %857 = vmatprep.mubr.f32.mxu0 0.0
    %858 = vmatmul.mubr.f32.gmra.mxu0 %v650
    %v859 = vpop.f32.mrf.mxu0
    %v860 = vadd.f32 %v681, %v859
    %v861 = vpop.f32.mrf.mxu0
    %862 = vmatprep.mubr.f32.mxu0 0.0
    %863 = vmatmul.mubr.f32.gmra.mxu0 %v651
    %v864 = vpop.f32.mrf.mxu0
    %v865 = vadd.f32 %v681, %v864
    %v866 = vpop.f32.mrf.mxu0
    %867 = vmatprep.mubr.f32.mxu0 0.0
    %868 = vmatmul.mubr.f32.gmra.mxu0 %v652
    %v869 = vpop.f32.mrf.mxu0
    %v870 = vadd.f32 %v681, %v869
    %v871 = vpop.f32.mrf.mxu0
    %872 = vmatprep.mubr.f32.mxu0 0.0
    %873 = vmatmul.mubr.f32.gmra.mxu0 %v653
    %v874 = vpop.f32.mrf.mxu0
    %v875 = vadd.f32 %v681, %v874
    %v876 = vpop.f32.mrf.mxu0
    %877 = vmatprep.mubr.f32.mxu0 0.0
    %878 = vmatmul.mubr.f32.gmra.mxu0 %v654
    %v879 = vpop.f32.mrf.mxu0
    %v880 = vadd.f32 %v681, %v879
    %v881 = vpop.f32.mrf.mxu0
    %882 = vmatprep.mubr.f32.mxu0 0.0
    %883 = vmatmul.mubr.f32.gmra.mxu0 %v655
    %v884 = vpop.f32.mrf.mxu0
    %v885 = vadd.f32 %v681, %v884
    %v886 = vpop.f32.mrf.mxu0
    %887 = vmatprep.mubr.f32.mxu0 0.0
    %888 = vmatmul.mubr.f32.gmra.mxu0 %v656
    %v889 = vpop.f32.mrf.mxu0
    %v890 = vadd.f32 %v681, %v889
    %v891 = vpop.f32.mrf.mxu0
    %892 = vmatprep.mubr.f32.mxu0 0.0
    %893 = vmatmul.mubr.f32.gmra.mxu0 %v657
    %v894 = vpop.f32.mrf.mxu0
    %v895 = vadd.f32 %v681, %v894
    %v896 = vpop.f32.mrf.mxu0
    %897 = vmatprep.mubr.f32.mxu0 0.0
    %898 = vmatmul.mubr.f32.gmra.mxu0 %v658
    %v899 = vpop.f32.mrf.mxu0
    %v900 = vadd.f32 %v681, %v899
    %v901 = vpop.f32.mrf.mxu0
    %902 = vmatprep.mubr.f32.mxu0 0.0
    %903 = vmatmul.mubr.f32.gmra.mxu0 %v659
    %v904 = vpop.f32.mrf.mxu0
    %v905 = vadd.f32 %v681, %v904
    %v906 = vpop.f32.mrf.mxu0
    %907 = vdwg.mxu0
    %908 = vxpose.xlu0.b32.start [1/16] %v750, 128
    %909 = vxpose.xlu0.b32.cont [2/16] %v755, 128
    %910 = vxpose.xlu0.b32.cont [3/16] %v760, 128
    %911 = vxpose.xlu0.b32.cont [4/16] %v765, 128
    %912 = vxpose.xlu0.b32.cont [5/16] %v770, 128
    %913 = vxpose.xlu0.b32.cont [6/16] %v775, 128
    %914 = vxpose.xlu0.b32.cont [7/16] %v780, 128
    %915 = vxpose.xlu0.b32.cont [8/16] %v785, 128
    %916 = vxpose.xlu0.b32.cont [9/16] %v790, 128
    %917 = vxpose.xlu0.b32.cont [10/16] %v795, 128
    %918 = vxpose.xlu0.b32.cont [11/16] %v800, 128
    %919 = vxpose.xlu0.b32.cont [12/16] %v805, 128
    %920 = vxpose.xlu0.b32.cont [13/16] %v810, 128
    %921 = vxpose.xlu0.b32.cont [14/16] %v815, 128
    %922 = vxpose.xlu0.b32.cont [15/16] %v820, 128
    %923 = vxpose.xlu0.b32.end [16/16] %v825, 128
    %v924 = vpop.trf.xlu0
    %v925 = vpop.trf.xlu0
    %v926 = vpop.trf.xlu0
    %v927 = vpop.trf.xlu0
    %v928 = vpop.trf.xlu0
    %v929 = vpop.trf.xlu0
    %v930 = vpop.trf.xlu0
    %v931 = vpop.trf.xlu0
    %v932 = vpop.trf.xlu0
    %v933 = vpop.trf.xlu0
    %v934 = vpop.trf.xlu0
    %v935 = vpop.trf.xlu0
    %v936 = vpop.trf.xlu0
    %v937 = vpop.trf.xlu0
    %v938 = vpop.trf.xlu0
    %v939 = vpop.trf.xlu0
    %940 = vxpose.xlu0.b32.start [1/16] %v830, 128
    %941 = vxpose.xlu0.b32.cont [2/16] %v835, 128
    %942 = vxpose.xlu0.b32.cont [3/16] %v840, 128
    %943 = vxpose.xlu0.b32.cont [4/16] %v845, 128
    %944 = vxpose.xlu0.b32.cont [5/16] %v850, 128
    %945 = vxpose.xlu0.b32.cont [6/16] %v855, 128
    %946 = vxpose.xlu0.b32.cont [7/16] %v860, 128
    %947 = vxpose.xlu0.b32.cont [8/16] %v865, 128
    %948 = vxpose.xlu0.b32.cont [9/16] %v870, 128
    %949 = vxpose.xlu0.b32.cont [10/16] %v875, 128
    %950 = vxpose.xlu0.b32.cont [11/16] %v880, 128
    %951 = vxpose.xlu0.b32.cont [12/16] %v885, 128
    %952 = vxpose.xlu0.b32.cont [13/16] %v890, 128
    %953 = vxpose.xlu0.b32.cont [14/16] %v895, 128
    %954 = vxpose.xlu0.b32.cont [15/16] %v900, 128
    %955 = vxpose.xlu0.b32.end [16/16] %v905, 128
    %v956 = vpop.trf.xlu0
    %v957 = vpop.trf.xlu0
    %v958 = vpop.trf.xlu0
    %v959 = vpop.trf.xlu0
    %v960 = vpop.trf.xlu0
    %v961 = vpop.trf.xlu0
    %v962 = vpop.trf.xlu0
    %v963 = vpop.trf.xlu0
    %v964 = vpop.trf.xlu0
    %v965 = vpop.trf.xlu0
    %v966 = vpop.trf.xlu0
    %v967 = vpop.trf.xlu0
    %v968 = vpop.trf.xlu0
    %v969 = vpop.trf.xlu0
    %v970 = vpop.trf.xlu0
    %v971 = vpop.trf.xlu0
    %v972 = vlaneseq
    %v973 = vand.u32 %v972, 127
    %vm974 = vcmp.lt.s32.totalorder %v973, 8
    %v975 = vsel %vm974, %v924, -1e+30
    %v976 = vsel %vm974, %v956, -1e+30
    %vm977 = vcmask 1041408
    %v978 = vsel %vm977, %v975, -inf
    %979 = vmax.xlane.f32.xlu0 %v978
    %v980 = vpop.xlane.xlu0 %979
    %v981 = vsel %vm977, %v976, -inf
    %982 = vmax.xlane.f32.xlu0 %v981
    %v983 = vpop.xlane.xlu0 %982
    %v984 = vsub.f32 %v975, %v980
    %v985 = vsub.f32 %v976, %v983
    %v986 = vmul.f32 %v984, 1.442695
    %v987 = vpow.pop %v986
    %v988 = vmul.f32 %v985, 1.442695
    %v989 = vpow.pop %v988
    %v990 = vsel %vm977, %v987, 0.0
    %991 = vadd.xlane.f32.xlu0 %v990
    %v992 = vpop.xlane.xlu0 %991
    %v993 = vsel %vm977, %v989, 0.0
    %994 = vadd.xlane.f32.xlu0 %v993
    %v995 = vpop.xlane.xlu0 %994
    %v996 = vrcp.pop %v992
    %v997 = vrcp.pop %v995
    %v998 = vmul.f32 %v987, %v996
    %v999 = vmul.f32 %v989, %v997
    %1000 = vst [vmem:[#allocation4] sm:$0x3] %v998
    %1001 = vst [vmem:[#allocation4 + $0x2] sm:$0x3] %v999
    %1002 = vmatprep.subr.mxu0 0.0
    %1003 = vmatpush1.msra.mxu0 %v45
    %1004 = vmatprep.subr.mxu0 0.0
    %1005 = vmatpush1.msra.mxu0 %v44
    %1006 = vmatprep.subr.mxu0 0.0
    %1007 = vmatpush1.msra.mxu0 %v43
    %1008 = vmatprep.subr.mxu0 0.0
    %1009 = vmatpush1.msra.mxu0 %v42
    %1010 = vmatprep.subr.mxu0 0.0
    %1011 = vmatpush1.msra.mxu0 %v41
    %1012 = vmatprep.subr.mxu0 0.0
    %1013 = vmatpush1.msra.mxu0 %v40
    %1014 = vmatprep.subr.mxu0 0.0
    %1015 = vmatpush1.msra.mxu0 %v39
    %1016 = vmatprep.subr.mxu0 0.0
    %1017 = vmatpush1.msra.mxu0 %v38
    %1018 = vmatprep.subr.mxu0 0.0
    %1019 = vmatpush1.msra.mxu0 %v37
    %1020 = vmatprep.subr.mxu0 0.0
    %1021 = vmatpush1.msra.mxu0 %v36
    %1022 = vmatprep.subr.mxu0 0.0
    %1023 = vmatpush1.msra.mxu0 %v35
    %1024 = vmatprep.subr.mxu0 0.0
    %1025 = vmatpush1.msra.mxu0 %v34
    %1026 = vmatprep.subr.mxu0 0.0
    %1027 = vmatpush1.msra.mxu0 %v33
    %1028 = vmatprep.subr.mxu0 0.0
    %1029 = vmatpush1.msra.mxu0 %v32
    %1030 = vmatprep.subr.mxu0 0.0
    %1031 = vmatpush1.msra.mxu0 %v31
    %1032 = vmatprep.subr.mxu0 0.0
    %1033 = vmatpush1.msra.mxu0 %v30
    %1034 = vmatprep.subr.mxu0 0.0
    %1035 = vmatpush2.msra.mxu0 0.0
    %1036 = vmatprep.subr.mxu0 0.0
    %1037 = vmatpush2.msra.mxu0 0.0
    %1038 = vmatprep.subr.mxu0 0.0
    %1039 = vmatpush2.msra.mxu0 0.0
    %1040 = vmatprep.subr.mxu0 0.0
    %1041 = vmatpush2.msra.mxu0 0.0
    %1042 = vmatprep.subr.mxu0 0.0
    %1043 = vmatpush2.msra.mxu0 0.0
    %1044 = vmatprep.subr.mxu0 0.0
    %1045 = vmatpush2.msra.mxu0 0.0
    %1046 = vmatprep.subr.mxu0 0.0
    %1047 = vmatpush2.msra.mxu0 0.0
    %1048 = vmatprep.subr.mxu0 0.0
    %1049 = vmatpush2.msra.mxu0 0.0
    %1050 = vmatprep.subr.mxu0 0.0
    %1051 = vmatpush2.msra.mxu0 0.0
    %1052 = vmatprep.subr.mxu0 0.0
    %1053 = vmatpush2.msra.mxu0 0.0
    %1054 = vmatprep.subr.mxu0 0.0
    %1055 = vmatpush2.msra.mxu0 0.0
    %1056 = vmatprep.subr.mxu0 0.0
    %1057 = vmatpush2.msra.mxu0 0.0
    %1058 = vmatprep.subr.mxu0 0.0
    %1059 = vmatpush2.msra.mxu0 0.0
    %1060 = vmatprep.subr.mxu0 0.0
    %1061 = vmatpush2.msra.mxu0 0.0
    %1062 = vmatprep.subr.mxu0 0.0
    %1063 = vmatpush2.msra.mxu0 0.0
    %1064 = vmatprep.subr.mxu0 0.0
    %1065 = vmatpush2.msra.mxu0 0.0
    %1066 = vmatprep.mubr.f32.mxu0 0.0
    %1067 = vmatmul.mubr.f32.gmra.mxu0 %v998
    %v1068 = vpop.f32.mrf.mxu0
    %v1069 = vadd.f32 0.0, %v1068
    %v1070 = vpop.f32.mrf.mxu0
    %1071 = vdwg.mxu0
    %1072 = vmatprep.subr.mxu0 0.0
    %1073 = vmatpush1.msra.mxu0 %v61
    %1074 = vmatprep.subr.mxu0 0.0
    %1075 = vmatpush1.msra.mxu0 %v60
    %1076 = vmatprep.subr.mxu0 0.0
    %1077 = vmatpush1.msra.mxu0 %v59
    %1078 = vmatprep.subr.mxu0 0.0
    %1079 = vmatpush1.msra.mxu0 %v58
    %1080 = vmatprep.subr.mxu0 0.0
    %1081 = vmatpush1.msra.mxu0 %v57
    %1082 = vmatprep.subr.mxu0 0.0
    %1083 = vmatpush1.msra.mxu0 %v56
    %1084 = vmatprep.subr.mxu0 0.0
    %1085 = vmatpush1.msra.mxu0 %v55
    %1086 = vmatprep.subr.mxu0 0.0
    %1087 = vmatpush1.msra.mxu0 %v54
    %1088 = vmatprep.subr.mxu0 0.0
    %1089 = vmatpush1.msra.mxu0 %v53
    %1090 = vmatprep.subr.mxu0 0.0
    %1091 = vmatpush1.msra.mxu0 %v52
    %1092 = vmatprep.subr.mxu0 0.0
    %1093 = vmatpush1.msra.mxu0 %v51
    %1094 = vmatprep.subr.mxu0 0.0
    %1095 = vmatpush1.msra.mxu0 %v50
    %1096 = vmatprep.subr.mxu0 0.0
    %1097 = vmatpush1.msra.mxu0 %v49
    %1098 = vmatprep.subr.mxu0 0.0
    %1099 = vmatpush1.msra.mxu0 %v48
    %1100 = vmatprep.subr.mxu0 0.0
    %1101 = vmatpush1.msra.mxu0 %v47
    %1102 = vmatprep.subr.mxu0 0.0
    %1103 = vmatpush1.msra.mxu0 %v46
    %1104 = vmatprep.subr.mxu0 0.0
    %1105 = vmatpush2.msra.mxu0 0.0
    %1106 = vmatprep.subr.mxu0 0.0
    %1107 = vmatpush2.msra.mxu0 0.0
    %1108 = vmatprep.subr.mxu0 0.0
    %1109 = vmatpush2.msra.mxu0 0.0
    %1110 = vmatprep.subr.mxu0 0.0
    %1111 = vmatpush2.msra.mxu0 0.0
    %1112 = vmatprep.subr.mxu0 0.0
    %1113 = vmatpush2.msra.mxu0 0.0
    %1114 = vmatprep.subr.mxu0 0.0
    %1115 = vmatpush2.msra.mxu0 0.0
    %1116 = vmatprep.subr.mxu0 0.0
    %1117 = vmatpush2.msra.mxu0 0.0
    %1118 = vmatprep.subr.mxu0 0.0
    %1119 = vmatpush2.msra.mxu0 0.0
    %1120 = vmatprep.subr.mxu0 0.0
    %1121 = vmatpush2.msra.mxu0 0.0
    %1122 = vmatprep.subr.mxu0 0.0
    %1123 = vmatpush2.msra.mxu0 0.0
    %1124 = vmatprep.subr.mxu0 0.0
    %1125 = vmatpush2.msra.mxu0 0.0
    %1126 = vmatprep.subr.mxu0 0.0
    %1127 = vmatpush2.msra.mxu0 0.0
    %1128 = vmatprep.subr.mxu0 0.0
    %1129 = vmatpush2.msra.mxu0 0.0
    %1130 = vmatprep.subr.mxu0 0.0
    %1131 = vmatpush2.msra.mxu0 0.0
    %1132 = vmatprep.subr.mxu0 0.0
    %1133 = vmatpush2.msra.mxu0 0.0
    %1134 = vmatprep.subr.mxu0 0.0
    %1135 = vmatpush2.msra.mxu0 0.0
    %1136 = vmatprep.mubr.f32.mxu0 0.0
    %1137 = vmatmul.mubr.f32.gmra.mxu0 %v999
    %v1138 = vpop.f32.mrf.mxu0
    %v1139 = vadd.f32 0.0, %v1138
    %v1140 = vpop.f32.mrf.mxu0
    %1141 = vdwg.mxu0
    %v1142 = vld [vmem:[%s5] sm:$0xff]
    %v1143 = vld [vmem:[%s5 + $0x8] sm:$0xff]
    %v1144 = vld [vmem:[%s5 + $0x10] sm:$0xff]
    %v1145 = vld [vmem:[%s5 + $0x18] sm:$0xff]
    %s1146 = scalar_lea.vmem %s5, 32
    %v1147 = vld [vmem:[%s1146] sm:$0xff]
    %v1148 = vld [vmem:[%s1146 + $0x8] sm:$0xff]
    %v1149 = vld [vmem:[%s1146 + $0x10] sm:$0xff]
    %v1150 = vld [vmem:[%s1146 + $0x18] sm:$0xff]
    %v1153 = vrot.slane %v1069, 1
    %vm1154 = vcmask 1041409
    %v1155 = vsel %vm1154, %v1139, %v1153
    %v1156 = vsel %vm82, %v1155, 0
    %1158 = vmatprep.subr.mxu0 0.0
    %1159 = vmatpush1.msra.mxu0 0.0
    %1160 = vmatprep.subr.mxu0 0.0
    %1161 = vmatpush1.msra.mxu0 0.0
    %1162 = vmatprep.subr.mxu0 0.0
    %1163 = vmatpush1.msra.mxu0 0.0
    %1164 = vmatprep.subr.mxu0 0.0
    %1165 = vmatpush1.msra.mxu0 0.0
    %1166 = vmatprep.subr.mxu0 0.0
    %1167 = vmatpush1.msra.mxu0 0.0
    %1168 = vmatprep.subr.mxu0 0.0
    %1169 = vmatpush1.msra.mxu0 0.0
    %1170 = vmatprep.subr.mxu0 0.0
    %1171 = vmatpush1.msra.mxu0 0.0
    %1172 = vmatprep.subr.mxu0 0.0
    %1173 = vmatpush1.msra.mxu0 0.0
    %1174 = vmatprep.subr.mxu0 0.0
    %1175 = vmatpush1.msra.mxu0 0.0
    %1176 = vmatprep.subr.mxu0 0.0
    %1177 = vmatpush1.msra.mxu0 0.0
    %1178 = vmatprep.subr.mxu0 0.0
    %1179 = vmatpush1.msra.mxu0 0.0
    %1180 = vmatprep.subr.mxu0 0.0
    %1181 = vmatpush1.msra.mxu0 0.0
    %1182 = vmatprep.subr.mxu0 0.0
    %1183 = vmatpush1.msra.mxu0 %v1150
    %1184 = vmatprep.subr.mxu0 0.0
    %1185 = vmatpush1.msra.mxu0 %v1149
    %1186 = vmatprep.subr.mxu0 0.0
    %1187 = vmatpush1.msra.mxu0 %v1148
    %1188 = vmatprep.subr.mxu0 0.0
    %1189 = vmatpush1.msra.mxu0 %v1147
    %1190 = vmatprep.subr.mxu0 0.0
    %1191 = vmatpush2.msra.mxu0 0.0
    %1192 = vmatprep.subr.mxu0 0.0
    %1193 = vmatpush2.msra.mxu0 0.0
    %1194 = vmatprep.subr.mxu0 0.0
    %1195 = vmatpush2.msra.mxu0 0.0
    %1196 = vmatprep.subr.mxu0 0.0
    %1197 = vmatpush2.msra.mxu0 0.0
    %1198 = vmatprep.subr.mxu0 0.0
    %1199 = vmatpush2.msra.mxu0 0.0
    %1200 = vmatprep.subr.mxu0 0.0
    %1201 = vmatpush2.msra.mxu0 0.0
    %1202 = vmatprep.subr.mxu0 0.0
    %1203 = vmatpush2.msra.mxu0 0.0
    %1204 = vmatprep.subr.mxu0 0.0
    %1205 = vmatpush2.msra.mxu0 0.0
    %1206 = vmatprep.subr.mxu0 0.0
    %1207 = vmatpush2.msra.mxu0 0.0
    %1208 = vmatprep.subr.mxu0 0.0
    %1209 = vmatpush2.msra.mxu0 0.0
    %1210 = vmatprep.subr.mxu0 0.0
    %1211 = vmatpush2.msra.mxu0 0.0
    %1212 = vmatprep.subr.mxu0 0.0
    %1213 = vmatpush2.msra.mxu0 0.0
    %1214 = vmatprep.subr.mxu0 0.0
    %1215 = vmatpush2.msra.mxu0 0.0
    %1216 = vmatprep.subr.mxu0 0.0
    %1217 = vmatpush2.msra.mxu0 0.0
    %1218 = vmatprep.subr.mxu0 0.0
    %1219 = vmatpush2.msra.mxu0 0.0
    %1220 = vmatprep.subr.mxu0 0.0
    %1221 = vmatpush2.msra.mxu0 0.0
    %1222 = vmatprep.mubr.f32.mxu0 0.0
    %1223 = vmatmul.mubr.f32.gmra.mxu0 %v1156
    %v1224 = vpop.f32.mrf.mxu0
    %v1225 = vadd.f32 0.0, %v1224
    %v1226 = vpop.f32.mrf.mxu0
    %1227 = vdwg.mxu0
    %v1228 = vrot.slane %v1139, 7
    %v1229 = vsel %vm1154, %v1228, %v1069
    %v1230 = vsel %vm82, %v1229, 0
    %1232 = vmatprep.subr.mxu0 0.0
    %1233 = vmatpush1.msra.mxu0 0.0
    %1234 = vmatprep.subr.mxu0 0.0
    %1235 = vmatpush1.msra.mxu0 0.0
    %1236 = vmatprep.subr.mxu0 0.0
    %1237 = vmatpush1.msra.mxu0 0.0
    %1238 = vmatprep.subr.mxu0 0.0
    %1239 = vmatpush1.msra.mxu0 0.0
    %1240 = vmatprep.subr.mxu0 0.0
    %1241 = vmatpush1.msra.mxu0 0.0
    %1242 = vmatprep.subr.mxu0 0.0
    %1243 = vmatpush1.msra.mxu0 0.0
    %1244 = vmatprep.subr.mxu0 0.0
    %1245 = vmatpush1.msra.mxu0 0.0
    %1246 = vmatprep.subr.mxu0 0.0
    %1247 = vmatpush1.msra.mxu0 0.0
    %1248 = vmatprep.subr.mxu0 0.0
    %1249 = vmatpush1.msra.mxu0 0.0
    %1250 = vmatprep.subr.mxu0 0.0
    %1251 = vmatpush1.msra.mxu0 0.0
    %1252 = vmatprep.subr.mxu0 0.0
    %1253 = vmatpush1.msra.mxu0 0.0
    %1254 = vmatprep.subr.mxu0 0.0
    %1255 = vmatpush1.msra.mxu0 0.0
    %1256 = vmatprep.subr.mxu0 0.0
    %1257 = vmatpush1.msra.mxu0 %v1145
    %1258 = vmatprep.subr.mxu0 0.0
    %1259 = vmatpush1.msra.mxu0 %v1144
    %1260 = vmatprep.subr.mxu0 0.0
    %1261 = vmatpush1.msra.mxu0 %v1143
    %1262 = vmatprep.subr.mxu0 0.0
    %1263 = vmatpush1.msra.mxu0 %v1142
    %1264 = vmatprep.subr.mxu0 0.0
    %1265 = vmatpush2.msra.mxu0 0.0
    %1266 = vmatprep.subr.mxu0 0.0
    %1267 = vmatpush2.msra.mxu0 0.0
    %1268 = vmatprep.subr.mxu0 0.0
    %1269 = vmatpush2.msra.mxu0 0.0
    %1270 = vmatprep.subr.mxu0 0.0
    %1271 = vmatpush2.msra.mxu0 0.0
    %1272 = vmatprep.subr.mxu0 0.0
    %1273 = vmatpush2.msra.mxu0 0.0
    %1274 = vmatprep.subr.mxu0 0.0
    %1275 = vmatpush2.msra.mxu0 0.0
    %1276 = vmatprep.subr.mxu0 0.0
    %1277 = vmatpush2.msra.mxu0 0.0
    %1278 = vmatprep.subr.mxu0 0.0
    %1279 = vmatpush2.msra.mxu0 0.0
    %1280 = vmatprep.subr.mxu0 0.0
    %1281 = vmatpush2.msra.mxu0 0.0
    %1282 = vmatprep.subr.mxu0 0.0
    %1283 = vmatpush2.msra.mxu0 0.0
    %1284 = vmatprep.subr.mxu0 0.0
    %1285 = vmatpush2.msra.mxu0 0.0
    %1286 = vmatprep.subr.mxu0 0.0
    %1287 = vmatpush2.msra.mxu0 0.0
    %1288 = vmatprep.subr.mxu0 0.0
    %1289 = vmatpush2.msra.mxu0 0.0
    %1290 = vmatprep.subr.mxu0 0.0
    %1291 = vmatpush2.msra.mxu0 0.0
    %1292 = vmatprep.subr.mxu0 0.0
    %1293 = vmatpush2.msra.mxu0 0.0
    %1294 = vmatprep.subr.mxu0 0.0
    %1295 = vmatpush2.msra.mxu0 0.0
    %1296 = vmatprep.mubr.f32.mxu0 0.0
    %1297 = vmatmul.mubr.f32.gmra.mxu0 %v1230
    %v1298 = vpop.f32.mrf.mxu0
    %v1299 = vadd.f32 %v1225, %v1298
    %v1300 = vpop.f32.mrf.mxu0
    %1301 = vdwg.mxu0
    %v1302 = vld [vmem:[%s6] sm:$0x1]
    %v1304 = vlaneseq
    %v1305 = vshrl.u32 %v1304, 7
    %v1306 = vsub.s32 0, %v1305
    %v1307 = vrot.slane %v1302, %v1306
    %v1309 = vadd.f32 %v1299, %v1307
    %1310 = vst [vmem:[#allocation2] sm:$0x3] %v1309
    // Predicated region
    $region30: #{tpu_custom_call.1} parent=1 // pred_check
      _
    $region31: #{tpu_custom_call.1} parent=1 // pred_check_branch
      %1312 = sbr.rel (0) target = $region33
    $region32: #{tpu_custom_call.1} parent=1 // pred_region
      %s1314 = ssub.s32 32, 32
      %1315 = vsyncadd [#allocation3], %s1314
      %s1317 = sshll.u32 [#allocation2], 4
      %s1318 = int_to_ptr.vmem [resolvable:$true] %s1317
      %1320 = dma.vmem_to_hbm [thread:$0]  %s1318, 32, %s7, [#allocation3]
    $region33: #{tpu_custom_call.1} parent=1 // pred_fallthru
      _
    // Predicated region
    $region34: #{tpu_custom_call.1} parent=1 // pred_check
      _
    $region35: #{tpu_custom_call.1} parent=1 // pred_check_branch
      %1322 = sbr.rel (0) target = $region37
    $region36: #{tpu_custom_call.1} parent=1 // pred_region
      %s1324 = ssub.s32 64, 64
      %1325 = vsyncadd [#allocation5], %s1324
      %s1326 = sshll.u32 [#allocation4], 4
      %s1327 = int_to_ptr.vmem [resolvable:$true] %s1326
      %1332 = dma.vmem_to_hbm [thread:$0]  %s1327, 64, %s8, [#allocation5], 32, 32, 2
    $region37: #{tpu_custom_call.1} parent=1 // pred_fallthru
      _
    // Predicated region
    $region38: #{tpu_custom_call.1} parent=1 // pred_check
      _
    $region39: #{tpu_custom_call.1} parent=1 // pred_check_branch
      %1334 = sbr.rel (0) target = $region41
    $region40: #{tpu_custom_call.1} parent=1 // pred_region
      %1335 = dma.done [#allocation3], 32
    $region41: #{tpu_custom_call.1} parent=1 // pred_fallthru
      _
    // Predicated region
    $region42: #{tpu_custom_call.1} parent=1 // pred_check
      _
    $region43: #{tpu_custom_call.1} parent=1 // pred_check_branch
      %1337 = sbr.rel (0) target = $region45
    $region44: #{tpu_custom_call.1} parent=1 // pred_region
      %1338 = dma.done [#allocation5], 64
    $region45: #{tpu_custom_call.1} parent=1 // pred_fallthru
      _
    %1339 = vsyncpa [#allocation3], 1
    %1340 = vsyncpa [#allocation5], 1

</llo_original>
